<compile_context>
chip_gen: v7x
topology: tpu7x:2x2x1
jax: 0.10.0
libtpu: 0.0.40
codegen_flags: <defaults>
</compile_context>

<pallas_src>
import jax
import jax.numpy as jnp
from jax.experimental import pallas as pl
from jax.experimental.pallas import tpu as pltpu


def _leaky_relu(x, slope=0.1):
    return jnp.where(x > 0, x, slope * x)


def _round_up(x, m):
    return (x + m - 1) // m * m


# ---------------------------------------------------------------------------
# Kernel: one batch tile, everything resident in VMEM.
# 3x (bf16 matmul on MXU, f32 accumulate) + f32 bias + LeakyReLU on the VPU.
# ---------------------------------------------------------------------------
def decoder_kernel(x_ref, w1_ref, b1_ref, w2_ref, b2_ref, w3_ref, b3_ref, out_ref):
    x = x_ref[...]  # already bf16

    h2 = jnp.dot(x, w1_ref[...], preferred_element_type=jnp.float32) + b1_ref[...]
    h2 = _leaky_relu(h2).astype(jnp.bfloat16)

    h1 = jnp.dot(h2, w2_ref[...], preferred_element_type=jnp.float32) + b2_ref[...]
    h1 = _leaky_relu(h1).astype(jnp.bfloat16)

    out = jnp.dot(h1, w3_ref[...], preferred_element_type=jnp.float32) + b3_ref[...]
    out_ref[...] = _leaky_relu(out).astype(out_ref.dtype)


# ---------------------------------------------------------------------------
# Tiling / VMEM policy
# ---------------------------------------------------------------------------
def _choose_tile_b(B_pad, tile_b=None):
    """Pick a batch tile that exactly divides B_pad (a multiple of 16).

    Default policy: the largest multiple-of-16 divisor of B_pad that is
    <= max(256, min(2048, B_pad // 4)):
      - >= 4 grid steps at large B  -> >= 2 steps per v7x TensorCore,
      - tile rows >= 256 when possible -> MXU streaming for the 3 matmuls,
      - tile capped at 2048 rows    -> working set stays a few MiB.
    """
    units = B_pad // 16
    if tile_b is not None:
        target = max(16, _round_up(int(tile_b), 16))
    else:
        target = max(256, min(2048, (B_pad // 4) // 16 * 16))
    best = 16
    max_d = min(units, max(1, target // 16))
    for d in range(1, max_d + 1):
        if units % d == 0:
            best = max(best, d * 16)
    return min(best, B_pad)


def _vmem_limit_bytes(tile_b, h3, h2, h1, out_dim, out_bytes):
    f32, bf16 = 4, 2
    x_tile = tile_b * h3 * bf16 * 2                            # double-buffered bf16 input tile
    o_tile = tile_b * out_dim * out_bytes * 2                  # double-buffered output tile
    weights = (h3 * h2 + h2 * h1 + h1 * out_dim) * bf16 * 2    # double-buffered (fetched once)
    biases = (h2 + h1 + out_dim) * f32 * 2
    inter = tile_b * (h2 + h1 + out_dim) * (f32 + bf16)        # f32 + bf16 temporaries
    est = x_tile + o_tile + weights + biases + inter
    # Tight, tile-derived limit (2x estimate) with a small safety floor; no
    # 64 MiB clamp so v7x keeps headroom and v5e/v6e aren't artificially capped.
    return int(max(2 * est, 4 * 1024 * 1024))


def _build_call(B_pad, tile_b, h3, h2, h1, out_dim, out_dtype):
    def rep(shape):
        # Constant block index across the grid: the pipeline fetches these once
        # and skips re-DMA on later steps (block index never changes).
        return pl.BlockSpec(shape, lambda i: (0, 0))

    return pl.pallas_call(
        decoder_kernel,
        out_shape=jax.ShapeDtypeStruct((B_pad, out_dim), out_dtype),
        grid_spec=pltpu.PrefetchScalarGridSpec(
            num_scalar_prefetch=0,
            grid=(B_pad // tile_b,),
            in_specs=[
                pl.BlockSpec((tile_b, h3), lambda i: (i, 0)),   # x tile (bf16)
                rep((h3, h2)), rep((1, h2)),
                rep((h2, h1)), rep((1, h1)),
                rep((h1, out_dim)), rep((1, out_dim)),
            ],
            out_specs=pl.BlockSpec((tile_b, out_dim), lambda i: (i, 0)),
        ),
        compiler_params=pltpu.CompilerParams(
            dimension_semantics=("parallel",),
            vmem_limit_bytes=_vmem_limit_bytes(
                tile_b, h3, h2, h1, out_dim, jnp.dtype(out_dtype).itemsize
            ),
        ),
    )


# ---------------------------------------------------------------------------
# Public wrapper
# ---------------------------------------------------------------------------
def decoder_basic(x, params, *, tile_b=None, out_dtype=jnp.bfloat16):
    """Fused 3-layer decoder forward.

    x:       (B, hidden_dim3) float32 (or bf16)
    params:  dict with w1 (h3,h2) bf16, b1 (1,h2) f32, w2 (h2,h1) bf16,
             b2 (1,h1) f32, w3 (h1,out) bf16, b3 (1,out) f32
    Returns (B, output_dim) in `out_dtype` (bf16 by default to halve the
    dominant output HBM traffic; pass jnp.float32 if downstream needs f32).
    """
    w1, b1, w2, b2, w3, b3 = (params[k] for k in ("w1", "b1", "w2", "b2", "w3", "b3"))
    B, h3 = x.shape
    h2 = w1.shape[1]
    h1 = w2.shape[1]
    out_dim = w3.shape[1]

    # Pad the batch only to a small quantum (16) and pick a tile that divides
    # it exactly -> no wasted matmul/DMA work on ragged batches.
    B_pad = _round_up(B, 16)
    tb = _choose_tile_b(B_pad, tile_b)

    x_p = x.astype(jnp.bfloat16)
    if B_pad != B:
        x_p = jnp.pad(x_p, ((0, B_pad - B), (0, 0)))

    out = _build_call(B_pad, tb, h3, h2, h1, out_dim, out_dtype)(
        x_p, w1, b1, w2, b2, w3, b3
    )
    return out if B_pad == B else out[:B]


def init_params(key, hidden_dim3, hidden_dim2, hidden_dim1, output_dim):
    """PyTorch-nn.Linear-style init: U(-1/sqrt(fan_in), 1/sqrt(fan_in)).

    Weights are stored in bf16 (MXU-native operand dtype); biases stay f32.
    Note: results therefore match a bf16-rounded copy of torch's f32 weights.
    """
    keys = jax.random.split(key, 6)

    def lin(kw, kb, fan_in, fan_out):
        bound = 1.0 / jnp.sqrt(fan_in)
        w = jax.random.uniform(kw, (fan_in, fan_out), jnp.float32, -bound, bound)
        b = jax.random.uniform(kb, (1, fan_out), jnp.float32, -bound, bound)
        return w.astype(jnp.bfloat16), b

    w1, b1 = lin(keys[0], keys[1], hidden_dim3, hidden_dim2)
    w2, b2 = lin(keys[2], keys[3], hidden_dim2, hidden_dim1)
    w3, b3 = lin(keys[4], keys[5], hidden_dim1, output_dim)
    return dict(w1=w1, b1=b1, w2=w2, b2=b2, w3=w3, b3=b3)


def decoder_ref(x, p, out_dtype=jnp.bfloat16):
    """Pure-JAX reference matching the kernel's bf16-operand / f32-accumulate math."""

    def layer(h, w, b):
        h = h.astype(jnp.bfloat16).astype(jnp.float32)
        return _leaky_relu(h @ w.astype(jnp.float32) + b)

    h2 = layer(x, p["w1"], p["b1"])
    h1 = layer(h2, p["w2"], p["b2"])
    return layer(h1, p["w3"], p["b3"]).astype(out_dtype)


if __name__ == "__main__":
    # Small shapes consistent with Decoder_basic(hidden_dim3, hidden_dim2, hidden_dim1, output_dim).
    hidden_dim3, hidden_dim2, hidden_dim1, output_dim = 32, 64, 128, 256

    key = jax.random.PRNGKey(0)
    kp, kx1, kx2 = jax.random.split(key, 3)
    params = init_params(kp, hidden_dim3, hidden_dim2, hidden_dim1, output_dim)

    # Case 1: aligned batch -> tile_b = 256, 2-step "parallel" grid.
    B = 512
    x = jax.random.normal(kx1, (B, hidden_dim3), dtype=jnp.float32)
    out = jax.block_until_ready(decoder_basic(x, params))
    ref = decoder_ref(x, params)
    assert out.shape == (B, output_dim) and out.dtype == jnp.bfloat16
    err = jnp.abs(out.astype(jnp.float32) - ref.astype(jnp.float32))
    assert jnp.allclose(out.astype(jnp.float32), ref.astype(jnp.float32),
                        atol=3e-2, rtol=3e-2), f"max abs err {float(err.max())}"

    # Case 2: ragged batch -> pads only to 144 and runs one exact 144-row tile
    # (no tile-multiple padding waste).
    Br = 130
    xr = jax.random.normal(kx2, (Br, hidden_dim3), dtype=jnp.float32)
    outr = jax.block_until_ready(decoder_basic(xr, params))
    refr = decoder_ref(xr, params)
    assert outr.shape == (Br, output_dim)
    errr = jnp.abs(outr.astype(jnp.float32) - refr.astype(jnp.float32))
    assert jnp.allclose(outr.astype(jnp.float32), refr.astype(jnp.float32),
                        atol=3e-2, rtol=3e-2), f"max abs err {float(errr.max())}"

    print("KERNEL_OK")
</pallas_src>

<mosaic_0001>
module attributes {stable_mosaic.version = 11 : i64} {
  func.func @decoder_kernel(%arg0: i32, %arg1: memref<256x32xbf16, #tpu.memory_space<vmem>>, %arg2: memref<32x64xbf16, #tpu.memory_space<vmem>>, %arg3: memref<1x64xf32, #tpu.memory_space<vmem>>, %arg4: memref<64x128xbf16, #tpu.memory_space<vmem>>, %arg5: memref<1x128xf32, #tpu.memory_space<vmem>>, %arg6: memref<128x256xbf16, #tpu.memory_space<vmem>>, %arg7: memref<1x256xf32, #tpu.memory_space<vmem>>, %arg8: memref<256x256xbf16, #tpu.memory_space<vmem>>) attributes {dimension_semantics = [#tpu.dimension_semantics<parallel>], iteration_bounds = array<i64: 2>, scalar_prefetch = 0 : i64, scratch_operands = 0 : i64, tpu.core_type = #tpu.core_type<tc>, window_params = [{transform_indices = @transform_0, window_bounds = array<i64: 256, 32>}, {pipeline_mode = #tpu.pipeline_mode<synchronous>, transform_indices = @transform_1, window_bounds = array<i64: 32, 64>}, {pipeline_mode = #tpu.pipeline_mode<synchronous>, transform_indices = @transform_2, window_bounds = array<i64: 1, 64>}, {pipeline_mode = #tpu.pipeline_mode<synchronous>, transform_indices = @transform_3, window_bounds = array<i64: 64, 128>}, {pipeline_mode = #tpu.pipeline_mode<synchronous>, transform_indices = @transform_4, window_bounds = array<i64: 1, 128>}, {pipeline_mode = #tpu.pipeline_mode<synchronous>, transform_indices = @transform_5, window_bounds = array<i64: 128, 256>}, {pipeline_mode = #tpu.pipeline_mode<synchronous>, transform_indices = @transform_6, window_bounds = array<i64: 1, 256>}, {transform_indices = @transform_7, window_bounds = array<i64: 256, 256>}]} {
    %c0 = arith.constant 0 : index
    %c0_0 = arith.constant 0 : index
    %0 = vector.load %arg1[%c0, %c0_0] : memref<256x32xbf16, #tpu.memory_space<vmem>>, vector<256x32xbf16>
    %c0_1 = arith.constant 0 : index
    %c0_2 = arith.constant 0 : index
    %1 = vector.load %arg2[%c0_1, %c0_2] : memref<32x64xbf16, #tpu.memory_space<vmem>>, vector<32x64xbf16>
    %cst = arith.constant dense<0.000000e+00> : vector<256x64xf32>
    %2 = tpu.matmul %0, %1, %cst {dimension_numbers = #tpu.dot_dimension_numbers<[1], [0], [0], [1], [0, 0, 1, 1], [], []>} : vector<256x32xbf16>, vector<32x64xbf16>, vector<256x64xf32> -> vector<256x64xf32>
    %c0_3 = arith.constant 0 : index
    %c0_4 = arith.constant 0 : index
    %3 = vector.load %arg3[%c0_3, %c0_4] : memref<1x64xf32, #tpu.memory_space<vmem>>, vector<1x64xf32>
    %4 = vector.broadcast %3 : vector<1x64xf32> to vector<256x64xf32>
    %5 = arith.addf %2, %4 : vector<256x64xf32>
    %cst_5 = arith.constant 0.000000e+00 : f32
    %6 = vector.broadcast %cst_5 : f32 to vector<256x64xf32>
    %7 = arith.cmpf ogt, %5, %6 : vector<256x64xf32>
    %cst_6 = arith.constant 1.000000e-01 : f32
    %8 = vector.broadcast %cst_6 : f32 to vector<256x64xf32>
    %9 = arith.mulf %8, %5 : vector<256x64xf32>
    %10 = arith.select %7, %5, %9 : vector<256x64xi1>, vector<256x64xf32>
    %11 = arith.truncf %10 : vector<256x64xf32> to vector<256x64xbf16>
    %c0_7 = arith.constant 0 : index
    %c0_8 = arith.constant 0 : index
    %12 = vector.load %arg4[%c0_7, %c0_8] : memref<64x128xbf16, #tpu.memory_space<vmem>>, vector<64x128xbf16>
    %cst_9 = arith.constant dense<0.000000e+00> : vector<256x128xf32>
    %13 = tpu.matmul %11, %12, %cst_9 {dimension_numbers = #tpu.dot_dimension_numbers<[1], [0], [0], [1], [0, 0, 1, 1], [], []>} : vector<256x64xbf16>, vector<64x128xbf16>, vector<256x128xf32> -> vector<256x128xf32>
    %c0_10 = arith.constant 0 : index
    %c0_11 = arith.constant 0 : index
    %14 = vector.load %arg5[%c0_10, %c0_11] : memref<1x128xf32, #tpu.memory_space<vmem>>, vector<1x128xf32>
    %15 = vector.broadcast %14 : vector<1x128xf32> to vector<256x128xf32>
    %16 = arith.addf %13, %15 : vector<256x128xf32>
    %cst_12 = arith.constant 0.000000e+00 : f32
    %17 = vector.broadcast %cst_12 : f32 to vector<256x128xf32>
    %18 = arith.cmpf ogt, %16, %17 : vector<256x128xf32>
    %cst_13 = arith.constant 1.000000e-01 : f32
    %19 = vector.broadcast %cst_13 : f32 to vector<256x128xf32>
    %20 = arith.mulf %19, %16 : vector<256x128xf32>
    %21 = arith.select %18, %16, %20 : vector<256x128xi1>, vector<256x128xf32>
    %22 = arith.truncf %21 : vector<256x128xf32> to vector<256x128xbf16>
    %c0_14 = arith.constant 0 : index
    %c0_15 = arith.constant 0 : index
    %23 = vector.load %arg6[%c0_14, %c0_15] : memref<128x256xbf16, #tpu.memory_space<vmem>>, vector<128x256xbf16>
    %cst_16 = arith.constant dense<0.000000e+00> : vector<256x256xf32>
    %24 = tpu.matmul %22, %23, %cst_16 {dimension_numbers = #tpu.dot_dimension_numbers<[1], [0], [0], [1], [0, 0, 1, 1], [], []>} : vector<256x128xbf16>, vector<128x256xbf16>, vector<256x256xf32> -> vector<256x256xf32>
    %c0_17 = arith.constant 0 : index
    %c0_18 = arith.constant 0 : index
    %25 = vector.load %arg7[%c0_17, %c0_18] : memref<1x256xf32, #tpu.memory_space<vmem>>, vector<1x256xf32>
    %26 = vector.broadcast %25 : vector<1x256xf32> to vector<256x256xf32>
    %27 = arith.addf %24, %26 : vector<256x256xf32>
    %cst_19 = arith.constant 0.000000e+00 : f32
    %28 = vector.broadcast %cst_19 : f32 to vector<256x256xf32>
    %29 = arith.cmpf ogt, %27, %28 : vector<256x256xf32>
    %cst_20 = arith.constant 1.000000e-01 : f32
    %30 = vector.broadcast %cst_20 : f32 to vector<256x256xf32>
    %31 = arith.mulf %30, %27 : vector<256x256xf32>
    %32 = arith.select %29, %27, %31 : vector<256x256xi1>, vector<256x256xf32>
    %33 = arith.truncf %32 : vector<256x256xf32> to vector<256x256xbf16>
    %c0_21 = arith.constant 0 : index
    %c0_22 = arith.constant 0 : index
    %34 = vector.load %arg8[%c0_21, %c0_22] : memref<256x256xbf16, #tpu.memory_space<vmem>>, vector<256x256xbf16>
    tpu.vector_store %arg8[%c0_21, %c0_22], %33 {strides = array<i32>} : memref<256x256xbf16, #tpu.memory_space<vmem>>, vector<256x256xbf16>,
    return
  }
  func.func @transform_0(%arg0: i32) -> (i32, i32) {
    %c0_i32 = arith.constant 0 : i32
    %c0_i32_0 = arith.constant 0 : i32
    return %arg0, %c0_i32 : i32, i32
  }
  func.func @transform_1(%arg0: i32) -> (i32, i32) {
    %c0_i32 = arith.constant 0 : i32
    %c0_i32_0 = arith.constant 0 : i32
    %c0_i32_1 = arith.constant 0 : i32
    return %c0_i32, %c0_i32_0 : i32, i32
  }
  func.func @transform_2(%arg0: i32) -> (i32, i32) {
    %c0_i32 = arith.constant 0 : i32
    %c0_i32_0 = arith.constant 0 : i32
    %c0_i32_1 = arith.constant 0 : i32
    return %c0_i32, %c0_i32_0 : i32, i32
  }
  func.func @transform_3(%arg0: i32) -> (i32, i32) {
    %c0_i32 = arith.constant 0 : i32
    %c0_i32_0 = arith.constant 0 : i32
    %c0_i32_1 = arith.constant 0 : i32
    return %c0_i32, %c0_i32_0 : i32, i32
  }
  func.func @transform_4(%arg0: i32) -> (i32, i32) {
    %c0_i32 = arith.constant 0 : i32
    %c0_i32_0 = arith.constant 0 : i32
    %c0_i32_1 = arith.constant 0 : i32
    return %c0_i32, %c0_i32_0 : i32, i32
  }
  func.func @transform_5(%arg0: i32) -> (i32, i32) {
    %c0_i32 = arith.constant 0 : i32
    %c0_i32_0 = arith.constant 0 : i32
    %c0_i32_1 = arith.constant 0 : i32
    return %c0_i32, %c0_i32_0 : i32, i32
  }
  func.func @transform_6(%arg0: i32) -> (i32, i32) {
    %c0_i32 = arith.constant 0 : i32
    %c0_i32_0 = arith.constant 0 : i32
    %c0_i32_1 = arith.constant 0 : i32
    return %c0_i32, %c0_i32_0 : i32, i32
  }
  func.func @transform_7(%arg0: i32) -> (i32, i32) {
    %c0_i32 = arith.constant 0 : i32
    %c0_i32_0 = arith.constant 0 : i32
    return %arg0, %c0_i32 : i32, i32
  }
}

</mosaic_0001>

<llo_original>
// kernel: tpu_custom_call.1
$region0: #{tpu_custom_call.1}
  #allocation0 [shape = 'u32[]', space=smem, size = 0x4, offset = 0x4, fixed_abs, tag = 'smem constant byte address 0x4 - core index']
  #allocation1 [shape = 'u32[144,128]{1,0:T(1,128)}', space=vmem, size = 0x12000, scoped, tag = 'internal scratch']
  %s0 = inlined_call_operand.vmem [shape: bf16[512,32], index: 0, kind: input, shape index: {}]
  %s1 = inlined_call_operand.vmem [shape: bf16[32,64], index: 1, kind: input, shape index: {}]
  %s2 = inlined_call_operand.vmem [shape: f32[1,64], index: 2, kind: input, shape index: {}]
  %s3 = inlined_call_operand.vmem [shape: bf16[64,128], index: 3, kind: input, shape index: {}]
  %s4 = inlined_call_operand.vmem [shape: f32[1,128], index: 4, kind: input, shape index: {}]
  %s5 = inlined_call_operand.vmem [shape: bf16[128,256], index: 5, kind: input, shape index: {}]
  %s6 = inlined_call_operand.vmem [shape: f32[1,256], index: 6, kind: input, shape index: {}]
  %s7 = inlined_call_operand.hbm [shape: bf16[512,256], index: 7, kind: output, shape index: {}]
  %s8 = sld [smem:[#allocation0]]
  $region61: #{tpu_custom_call.1} parent=0
    _
  %s10 = ssub.s32 1, %s8
  %s11 = scalar_select 0, %s10, %s8
  $region1: #{tpu_custom_call.1} parent=0
    #allocation2 [shape = 'u8[262144]{0}', space=vmem, size = 0x40000, scoped, tag = 'output window, operand 0']
    #allocation3 [shape = 's32[2]{0}', space=sflag, size = 0x8, scoped, tag = 'scoped memory for tpu_custom_call.1']
    %12 = vsyncpa [#allocation3], 0
    %s13 = scalar_lea.sflag [#allocation3], 1
    %14 = vsyncpa %s13, 0
    loop: start=0, step=1, limit=4
    $region2: #{tpu_custom_call.1} parent=1 // loop_pre_header
      _
    $region3: #{tpu_custom_call.1} parent=1 // loop_header
      %s16 = sphi 0, %s20
      %p17 = scmp.ge.s32.totalorder %s16, 4
      %s26 = sphi 0, %s28
      %s29 = sphi 0, %s26
      %s30 = sphi 0, %s29
      %s46 = sphi 0, %s30
      %s50 = sphi 0, %s50
      %s52 = sphi 0, %s50
      %s53 = sphi 0, %s52
      %s67 = sphi 0, %s53
      %s71 = sphi 0, %s71
      %s73 = sphi 0, %s71
      %s74 = sphi 0, %s73
      %s88 = sphi 0, %s74
      %s92 = sphi 0, %s92
      %s94 = sphi 0, %s92
      %s95 = sphi 0, %s94
      %s109 = sphi 0, %s95
      %s113 = sphi 0, %s113
      %s115 = sphi 0, %s113
      %s116 = sphi 0, %s115
      %s130 = sphi 0, %s116
      %s134 = sphi 0, %s134
      %s136 = sphi 0, %s134
      %s137 = sphi 0, %s136
      %s151 = sphi 0, %s137
      %s155 = sphi 0, %s155
      %s157 = sphi 0, %s155
      %s158 = sphi 0, %s157
      %s172 = sphi 0, %s158
      %s178 = sphi 0, %s180
      %s181 = sphi 0, %s178
      %s182 = sphi 0, %s181
      %s198 = sphi 0, %s182
    $region4: #{tpu_custom_call.1} parent=1 // loop_header_branch
      %19 = sbr.rel (%p17) target = $region8
    $region5: #{tpu_custom_call.1} parent=1 // loop_body
      %s21 = ssub.s32 %s16, 1
      %s22 = ssub.s32 %s16, 2
      %s23 = sadd.s32 %s16, 1
      %s24 = ssub.s32 %s16, %s23
      %p25 = scmp.eq.s32.totalorder %s24, 0
      %s27 = sadd.s32 %s26, 1
      %s28 = scalar_select %p25, %s26, %s27
      %p31 = pneg %p25
      %p32 = scmp.eq.s32.totalorder %s16, 1
      %p33 = por %p31, %p32
      %p34 = scmp.ne.s32.totalorder %s26, %s29
      %p35 = scmp.eq.s32.totalorder %s16, 0
      %p36 = por %p34, %p35
      %p37 = scmp.ne.s32.totalorder %s26, %s29
      %p38 = scmp.eq.s32.totalorder %s21, 1
      %p39 = por %p37, %p38
      %p40 = scmp.ne.s32.totalorder %s29, %s30
      %p41 = scmp.eq.s32.totalorder %s21, 0
      %p42 = por %p40, %p41
      %p43 = scmp.ne.s32.totalorder %s29, %s30
      %p44 = scmp.eq.s32.totalorder %s22, 1
      %p45 = por %p43, %p44
      %p47 = scmp.ne.s32.totalorder %s30, %s46
      %p48 = scmp.eq.s32.totalorder %s22, 0
      %p49 = por %p47, %p48
      %s51 = sadd.s32 %s50, 1
      %p54 = scmp.eq.s32.totalorder %s16, 1
      %p55 = scmp.ne.s32.totalorder %s50, %s52
      %p56 = scmp.eq.s32.totalorder %s16, 0
      %p57 = por %p55, %p56
      %p58 = scmp.ne.s32.totalorder %s50, %s52
      %p59 = scmp.eq.s32.totalorder %s21, 1
      %p60 = por %p58, %p59
      %p61 = scmp.ne.s32.totalorder %s52, %s53
      %p62 = scmp.eq.s32.totalorder %s21, 0
      %p63 = por %p61, %p62
      %p64 = scmp.ne.s32.totalorder %s52, %s53
      %p65 = scmp.eq.s32.totalorder %s22, 1
      %p66 = por %p64, %p65
      %p68 = scmp.ne.s32.totalorder %s53, %s67
      %p69 = scmp.eq.s32.totalorder %s22, 0
      %p70 = por %p68, %p69
      %s72 = sadd.s32 %s71, 1
      %p75 = scmp.eq.s32.totalorder %s16, 1
      %p76 = scmp.ne.s32.totalorder %s71, %s73
      %p77 = scmp.eq.s32.totalorder %s16, 0
      %p78 = por %p76, %p77
      %p79 = scmp.ne.s32.totalorder %s71, %s73
      %p80 = scmp.eq.s32.totalorder %s21, 1
      %p81 = por %p79, %p80
      %p82 = scmp.ne.s32.totalorder %s73, %s74
      %p83 = scmp.eq.s32.totalorder %s21, 0
      %p84 = por %p82, %p83
      %p85 = scmp.ne.s32.totalorder %s73, %s74
      %p86 = scmp.eq.s32.totalorder %s22, 1
      %p87 = por %p85, %p86
      %p89 = scmp.ne.s32.totalorder %s74, %s88
      %p90 = scmp.eq.s32.totalorder %s22, 0
      %p91 = por %p89, %p90
      %s93 = sadd.s32 %s92, 1
      %p96 = scmp.eq.s32.totalorder %s16, 1
      %p97 = scmp.ne.s32.totalorder %s92, %s94
      %p98 = scmp.eq.s32.totalorder %s16, 0
      %p99 = por %p97, %p98
      %p100 = scmp.ne.s32.totalorder %s92, %s94
      %p101 = scmp.eq.s32.totalorder %s21, 1
      %p102 = por %p100, %p101
      %p103 = scmp.ne.s32.totalorder %s94, %s95
      %p104 = scmp.eq.s32.totalorder %s21, 0
      %p105 = por %p103, %p104
      %p106 = scmp.ne.s32.totalorder %s94, %s95
      %p107 = scmp.eq.s32.totalorder %s22, 1
      %p108 = por %p106, %p107
      %p110 = scmp.ne.s32.totalorder %s95, %s109
      %p111 = scmp.eq.s32.totalorder %s22, 0
      %p112 = por %p110, %p111
      %s114 = sadd.s32 %s113, 1
      %p117 = scmp.eq.s32.totalorder %s16, 1
      %p118 = scmp.ne.s32.totalorder %s113, %s115
      %p119 = scmp.eq.s32.totalorder %s16, 0
      %p120 = por %p118, %p119
      %p121 = scmp.ne.s32.totalorder %s113, %s115
      %p122 = scmp.eq.s32.totalorder %s21, 1
      %p123 = por %p121, %p122
      %p124 = scmp.ne.s32.totalorder %s115, %s116
      %p125 = scmp.eq.s32.totalorder %s21, 0
      %p126 = por %p124, %p125
      %p127 = scmp.ne.s32.totalorder %s115, %s116
      %p128 = scmp.eq.s32.totalorder %s22, 1
      %p129 = por %p127, %p128
      %p131 = scmp.ne.s32.totalorder %s116, %s130
      %p132 = scmp.eq.s32.totalorder %s22, 0
      %p133 = por %p131, %p132
      %s135 = sadd.s32 %s134, 1
      %p138 = scmp.eq.s32.totalorder %s16, 1
      %p139 = scmp.ne.s32.totalorder %s134, %s136
      %p140 = scmp.eq.s32.totalorder %s16, 0
      %p141 = por %p139, %p140
      %p142 = scmp.ne.s32.totalorder %s134, %s136
      %p143 = scmp.eq.s32.totalorder %s21, 1
      %p144 = por %p142, %p143
      %p145 = scmp.ne.s32.totalorder %s136, %s137
      %p146 = scmp.eq.s32.totalorder %s21, 0
      %p147 = por %p145, %p146
      %p148 = scmp.ne.s32.totalorder %s136, %s137
      %p149 = scmp.eq.s32.totalorder %s22, 1
      %p150 = por %p148, %p149
      %p152 = scmp.ne.s32.totalorder %s137, %s151
      %p153 = scmp.eq.s32.totalorder %s22, 0
      %p154 = por %p152, %p153
      %s156 = sadd.s32 %s155, 1
      %p159 = scmp.eq.s32.totalorder %s16, 1
      %p160 = scmp.ne.s32.totalorder %s155, %s157
      %p161 = scmp.eq.s32.totalorder %s16, 0
      %p162 = por %p160, %p161
      %p163 = scmp.ne.s32.totalorder %s155, %s157
      %p164 = scmp.eq.s32.totalorder %s21, 1
      %p165 = por %p163, %p164
      %p166 = scmp.ne.s32.totalorder %s157, %s158
      %p167 = scmp.eq.s32.totalorder %s21, 0
      %p168 = por %p166, %p167
      %p169 = scmp.ne.s32.totalorder %s157, %s158
      %p170 = scmp.eq.s32.totalorder %s22, 1
      %p171 = por %p169, %p170
      %p173 = scmp.ne.s32.totalorder %s158, %s172
      %p174 = scmp.eq.s32.totalorder %s22, 0
      %p175 = por %p173, %p174
      %s176 = ssub.s32 %s16, %s23
      %p177 = scmp.eq.s32.totalorder %s176, 0
      %s179 = sadd.s32 %s178, 1
      %s180 = scalar_select %p177, %s178, %s179
      %p183 = pneg %p177
      %p184 = scmp.eq.s32.totalorder %s16, 1
      %p185 = por %p183, %p184
      %p186 = scmp.ne.s32.totalorder %s178, %s181
      %p187 = scmp.eq.s32.totalorder %s16, 0
      %p188 = por %p186, %p187
      %p189 = scmp.ne.s32.totalorder %s178, %s181
      %p190 = scmp.eq.s32.totalorder %s21, 1
      %p191 = por %p189, %p190
      %p192 = scmp.ne.s32.totalorder %s181, %s182
      %p193 = scmp.eq.s32.totalorder %s21, 0
      %p194 = por %p192, %p193
      %p195 = scmp.ne.s32.totalorder %s181, %s182
      %p196 = scmp.eq.s32.totalorder %s22, 1
      %p197 = por %p195, %p196
      %p199 = scmp.ne.s32.totalorder %s182, %s198
      %p200 = scmp.eq.s32.totalorder %s22, 0
      %p201 = por %p199, %p200
      %p202 = scmp.le.s32.totalorder 1, %s16
      %p203 = scmp.lt.s32.totalorder %s16, 3
      %p204 = pnand %p202, %p203
      %p205 = pneg %p204
      // Predicated region
      $region9: #{tpu_custom_call.1} parent=5 // pred_check
        _
      $region10: #{tpu_custom_call.1} parent=5 // pred_check_branch
        %207 = sbr.rel (%p204) target = $region12
      $region11: #{tpu_custom_call.1} parent=5 // pred_region
        %s208 = ssub.s32 %s16, 1
        // Predicated region
        $region13: #{tpu_custom_call.1} parent=11 // pred_check
          %p209 = pneg %p63
        $region14: #{tpu_custom_call.1} parent=11 // pred_check_branch
          %211 = sbr.rel (%p209) target = $region16
        $region15: #{tpu_custom_call.1} parent=11 // pred_region
          _
        $region16: #{tpu_custom_call.1} parent=11 // pred_fallthru
          _
        // Predicated region
        $region17: #{tpu_custom_call.1} parent=11 // pred_check
          %p212 = pneg %p84
        $region18: #{tpu_custom_call.1} parent=11 // pred_check_branch
          %214 = sbr.rel (%p212) target = $region20
        $region19: #{tpu_custom_call.1} parent=11 // pred_region
          _
        $region20: #{tpu_custom_call.1} parent=11 // pred_fallthru
          _
        // Predicated region
        $region21: #{tpu_custom_call.1} parent=11 // pred_check
          %p215 = pneg %p105
        $region22: #{tpu_custom_call.1} parent=11 // pred_check_branch
          %217 = sbr.rel (%p215) target = $region24
        $region23: #{tpu_custom_call.1} parent=11 // pred_region
          _
        $region24: #{tpu_custom_call.1} parent=11 // pred_fallthru
          _
        // Predicated region
        $region25: #{tpu_custom_call.1} parent=11 // pred_check
          %p218 = pneg %p126
        $region26: #{tpu_custom_call.1} parent=11 // pred_check_branch
          %220 = sbr.rel (%p218) target = $region28
        $region27: #{tpu_custom_call.1} parent=11 // pred_region
          _
        $region28: #{tpu_custom_call.1} parent=11 // pred_fallthru
          _
        // Predicated region
        $region29: #{tpu_custom_call.1} parent=11 // pred_check
          %p221 = pneg %p147
        $region30: #{tpu_custom_call.1} parent=11 // pred_check_branch
          %223 = sbr.rel (%p221) target = $region32
        $region31: #{tpu_custom_call.1} parent=11 // pred_region
          _
        $region32: #{tpu_custom_call.1} parent=11 // pred_fallthru
          _
        // Predicated region
        $region33: #{tpu_custom_call.1} parent=11 // pred_check
          %p224 = pneg %p168
        $region34: #{tpu_custom_call.1} parent=11 // pred_check_branch
          %226 = sbr.rel (%p224) target = $region36
        $region35: #{tpu_custom_call.1} parent=11 // pred_region
          _
        $region36: #{tpu_custom_call.1} parent=11 // pred_fallthru
          _
      $region12: #{tpu_custom_call.1} parent=5 // pred_fallthru
        _
      %p227 = scmp.lt.s32.totalorder %s16, 2
      // Predicated region
      $region37: #{tpu_custom_call.1} parent=5 // pred_check
        %p228 = pneg %p227
      $region38: #{tpu_custom_call.1} parent=5 // pred_check_branch
        %230 = sbr.rel (%p228) target = $region40
      $region39: #{tpu_custom_call.1} parent=5 // pred_region
        // Predicated region
        $region41: #{tpu_custom_call.1} parent=39 // pred_check
          %p231 = pneg %p36
        $region42: #{tpu_custom_call.1} parent=39 // pred_check_branch
          %233 = sbr.rel (%p231) target = $region44
        $region43: #{tpu_custom_call.1} parent=39 // pred_region
          %s234 = smul.u32 32, %s16
          %p235 = scmp.lt.s32.totalorder %s234, 63
          %s236 = scalar_select %p235, %s234, 63
          %s237 = smul.addr %s236, 4
          %s238 = scalar_lea.vmem %s0, %s237
          %s239 = smul.u32 32, %s16
        $region44: #{tpu_custom_call.1} parent=39 // pred_fallthru
          _
      $region40: #{tpu_custom_call.1} parent=5 // pred_fallthru
        _
      %p240 = scmp.le.s32.totalorder 1, %s16
      %p241 = scmp.lt.s32.totalorder %s16, 3
      %p242 = pnand %p240, %p241
      %p243 = pneg %p242
      // Predicated region
      $region45: #{tpu_custom_call.1} parent=5 // pred_check
        _
      $region46: #{tpu_custom_call.1} parent=5 // pred_check_branch
        %245 = sbr.rel (%p242) target = $region48
      $region47: #{tpu_custom_call.1} parent=5 // pred_region
        %s246 = ssub.s32 %s16, 1
        %s247 = smul.u32 32, %s21
        %p248 = scmp.lt.s32.totalorder %s247, 63
        %s249 = scalar_select %p248, %s247, 63
        %s250 = smul.addr %s249, 4
        %s251 = scalar_lea.vmem %s0, %s250
        %p252 = pneg %p42
        %p253 = pneg %p39
        %p254 = pneg %p63
        %p255 = pneg %p60
        %p256 = pneg %p84
        %p257 = pneg %p81
        %p258 = pneg %p105
        %p259 = pneg %p102
        %p260 = pneg %p126
        %p261 = pneg %p123
        %p262 = pneg %p147
        %p263 = pneg %p144
        %p264 = pneg %p168
        %p265 = pneg %p165
        %p266 = pneg %p194
        %p267 = pneg %p191
        %s268 = sand.u32 %s181, 1
        %s269 = scalar_lea.sflag [#allocation3], %s268
        %s270 = sand.u32 %s181, 1
        %s271 = smul.addr %s270, 256
        %s272 = scalar_lea.vmem [#allocation2], %s271
        %s273 = smul.u32 32, %s21
        %p274 = scmp.lt.s32.totalorder %s273, 63
        %s275 = scalar_select %p274, %s273, 63
        %s276 = smul.addr %s275, 4
        %s277 = scalar_lea.vmem %s0, %s276
        %s278 = smul.u32 32, %s21
        %s279 = smul.u32 32, %s21
        %v281 = vld [vmem:[%s277] sm:$0xf]
        %v282 = vld [vmem:[%s277 + $0x4] sm:$0xf]
        %v283 = vld [vmem:[%s277 + $0x8] sm:$0xf]
        %v284 = vld [vmem:[%s277 + $0xc] sm:$0xf]
        %v285 = vld [vmem:[%s277 + $0x10] sm:$0xf]
        %v286 = vld [vmem:[%s277 + $0x14] sm:$0xf]
        %v287 = vld [vmem:[%s277 + $0x18] sm:$0xf]
        %v288 = vld [vmem:[%s277 + $0x1c] sm:$0xf]
        %v289 = vld [vmem:[%s277 + $0x20] sm:$0xf]
        %v290 = vld [vmem:[%s277 + $0x24] sm:$0xf]
        %v291 = vld [vmem:[%s277 + $0x28] sm:$0xf]
        %v292 = vld [vmem:[%s277 + $0x2c] sm:$0xf]
        %v293 = vld [vmem:[%s277 + $0x30] sm:$0xf]
        %v294 = vld [vmem:[%s277 + $0x34] sm:$0xf]
        %v295 = vld [vmem:[%s277 + $0x38] sm:$0xf]
        %v296 = vld [vmem:[%s277 + $0x3c] sm:$0xf]
        %v297 = vld [vmem:[%s277 + $0x40] sm:$0xf]
        %v298 = vld [vmem:[%s277 + $0x44] sm:$0xf]
        %v299 = vld [vmem:[%s277 + $0x48] sm:$0xf]
        %v300 = vld [vmem:[%s277 + $0x4c] sm:$0xf]
        %v301 = vld [vmem:[%s277 + $0x50] sm:$0xf]
        %v302 = vld [vmem:[%s277 + $0x54] sm:$0xf]
        %v303 = vld [vmem:[%s277 + $0x58] sm:$0xf]
        %v304 = vld [vmem:[%s277 + $0x5c] sm:$0xf]
        %v305 = vld [vmem:[%s277 + $0x60] sm:$0xf]
        %v306 = vld [vmem:[%s277 + $0x64] sm:$0xf]
        %v307 = vld [vmem:[%s277 + $0x68] sm:$0xf]
        %v308 = vld [vmem:[%s277 + $0x6c] sm:$0xf]
        %v309 = vld [vmem:[%s277 + $0x70] sm:$0xf]
        %v310 = vld [vmem:[%s277 + $0x74] sm:$0xf]
        %v311 = vld [vmem:[%s277 + $0x78] sm:$0xf]
        %v312 = vld [vmem:[%s277 + $0x7c] sm:$0xf]
        %v313 = vld [vmem:[%s1] sm:$0xf]
        %v314 = vld [vmem:[%s1 + $0x4] sm:$0xf]
        %v315 = vld [vmem:[%s1 + $0x8] sm:$0xf]
        %v316 = vld [vmem:[%s1 + $0xc] sm:$0xf]
        %v317 = vld [vmem:[%s2] sm:$0x1]
        %v319 = vlaneseq
        %v320 = vshrl.u32 %v319, 7
        %v321 = vsub.s32 0, %v320
        %v322 = vrot.slane %v317, %v321
        %v356 = vunpack.c.l.b16 %v281
        %v357 = vunpack.c.l.b16 %v282
        %v358 = vunpack.c.l.b16 %v283
        %v359 = vunpack.c.l.b16 %v284
        %v360 = vunpack.c.l.b16 %v285
        %v361 = vunpack.c.l.b16 %v286
        %v362 = vunpack.c.l.b16 %v287
        %v363 = vunpack.c.l.b16 %v288
        %v364 = vunpack.c.l.b16 %v289
        %v365 = vunpack.c.l.b16 %v290
        %v366 = vunpack.c.l.b16 %v291
        %v367 = vunpack.c.l.b16 %v292
        %v368 = vunpack.c.l.b16 %v293
        %v369 = vunpack.c.l.b16 %v294
        %v370 = vunpack.c.l.b16 %v295
        %v371 = vunpack.c.l.b16 %v296
        %v372 = vunpack.c.l.b16 %v297
        %v373 = vunpack.c.l.b16 %v298
        %v374 = vunpack.c.l.b16 %v299
        %v375 = vunpack.c.l.b16 %v300
        %v376 = vunpack.c.l.b16 %v301
        %v377 = vunpack.c.l.b16 %v302
        %v378 = vunpack.c.l.b16 %v303
        %v379 = vunpack.c.l.b16 %v304
        %v380 = vunpack.c.l.b16 %v305
        %v381 = vunpack.c.l.b16 %v306
        %v382 = vunpack.c.l.b16 %v307
        %v383 = vunpack.c.l.b16 %v308
        %v384 = vunpack.c.l.b16 %v309
        %v385 = vunpack.c.l.b16 %v310
        %v386 = vunpack.c.l.b16 %v311
        %v387 = vunpack.c.l.b16 %v312
        %v388 = vpack.c.b16 %v357, %v356
        %v389 = vpack.c.b16 %v359, %v358
        %v390 = vpack.c.b16 %v361, %v360
        %v391 = vpack.c.b16 %v363, %v362
        %v392 = vpack.c.b16 %v365, %v364
        %v393 = vpack.c.b16 %v367, %v366
        %v394 = vpack.c.b16 %v369, %v368
        %v395 = vpack.c.b16 %v371, %v370
        %v396 = vpack.c.b16 %v373, %v372
        %v397 = vpack.c.b16 %v375, %v374
        %v398 = vpack.c.b16 %v377, %v376
        %v399 = vpack.c.b16 %v379, %v378
        %v400 = vpack.c.b16 %v381, %v380
        %v401 = vpack.c.b16 %v383, %v382
        %v402 = vpack.c.b16 %v385, %v384
        %v403 = vpack.c.b16 %v387, %v386
        %v408 = vunpack.c.l.b16 %v313
        %v409 = vunpack.c.l.b16 %v314
        %v410 = vunpack.c.l.b16 %v315
        %v411 = vunpack.c.l.b16 %v316
        %v412 = vpack.c.b16 %v409, %v408
        %v413 = vpack.c.b16 %v411, %v410
        %vm416 = vcmask 261120
        %v418 = vsel %vm416, %v388, 0
        %v421 = vsel %vm416, %v389, 0
        %v424 = vsel %vm416, %v390, 0
        %v427 = vsel %vm416, %v391, 0
        %v430 = vsel %vm416, %v392, 0
        %v433 = vsel %vm416, %v393, 0
        %v436 = vsel %vm416, %v394, 0
        %v439 = vsel %vm416, %v395, 0
        %v442 = vsel %vm416, %v396, 0
        %v445 = vsel %vm416, %v397, 0
        %v448 = vsel %vm416, %v398, 0
        %v451 = vsel %vm416, %v399, 0
        %v454 = vsel %vm416, %v400, 0
        %v457 = vsel %vm416, %v401, 0
        %v460 = vsel %vm416, %v402, 0
        %v463 = vsel %vm416, %v403, 0
        %465 = vmatprep.subr.bf16.mxu0 0
        %466 = vmatpush1.bf16.msra.mxu0 %v412
        %467 = vmatprep.subr.bf16.mxu0 0
        %468 = vmatpush1.bf16.msra.mxu0 %v413
        %469 = vmatprep.subr.bf16.mxu0 0
        %470 = vmatpush1.bf16.msra.mxu0 0
        %471 = vmatprep.subr.bf16.mxu0 0
        %472 = vmatpush1.bf16.msra.mxu0 0
        %473 = vmatprep.subr.bf16.mxu0 0
        %474 = vmatpush1.bf16.msra.mxu0 0
        %475 = vmatprep.subr.bf16.mxu0 0
        %476 = vmatpush1.bf16.msra.mxu0 0
        %477 = vmatprep.subr.bf16.mxu0 0
        %478 = vmatpush1.bf16.msra.mxu0 0
        %479 = vmatprep.subr.bf16.mxu0 0
        %480 = vmatpush1.bf16.msra.mxu0 0
        %481 = vmatprep.subr.bf16.mxu0 0
        %482 = vmatpush1.bf16.msra.mxu0 0
        %483 = vmatprep.subr.bf16.mxu0 0
        %484 = vmatpush1.bf16.msra.mxu0 0
        %485 = vmatprep.subr.bf16.mxu0 0
        %486 = vmatpush1.bf16.msra.mxu0 0
        %487 = vmatprep.subr.bf16.mxu0 0
        %488 = vmatpush1.bf16.msra.mxu0 0
        %489 = vmatprep.subr.bf16.mxu0 0
        %490 = vmatpush1.bf16.msra.mxu0 0
        %491 = vmatprep.subr.bf16.mxu0 0
        %492 = vmatpush1.bf16.msra.mxu0 0
        %493 = vmatprep.subr.bf16.mxu0 0
        %494 = vmatpush1.bf16.msra.mxu0 0
        %495 = vmatprep.subr.bf16.mxu0 0
        %496 = vmatpush1.bf16.msra.mxu0 0
        %497 = vmatprep.mubr.bf16.mxu0 0
        %498 = vmatmul.mubr.bf16.gmra.mrb[0].mxu0 %v418
        %v499 = vpop.f32.mrb[0].mxu0
        %v500 = vadd.f32 %v322, %v499
        %v501 = vpop.f32.mrb[0].mxu0
        %v502 = vpop.f32.mrb[0].mxu0
        %v503 = vadd.f32 %v322, %v502
        %v504 = vpop.f32.mrb[0].mxu0
        %505 = vmatprep.mubr.bf16.mxu0 0
        %506 = vmatmul.mubr.bf16.gmra.mrb[0].mxu0 %v421
        %v507 = vpop.f32.mrb[0].mxu0
        %v508 = vadd.f32 %v322, %v507
        %v509 = vpop.f32.mrb[0].mxu0
        %v510 = vpop.f32.mrb[0].mxu0
        %v511 = vadd.f32 %v322, %v510
        %v512 = vpop.f32.mrb[0].mxu0
        %513 = vmatprep.mubr.bf16.mxu0 0
        %514 = vmatmul.mubr.bf16.gmra.mrb[0].mxu0 %v424
        %v515 = vpop.f32.mrb[0].mxu0
        %v516 = vadd.f32 %v322, %v515
        %v517 = vpop.f32.mrb[0].mxu0
        %v518 = vpop.f32.mrb[0].mxu0
        %v519 = vadd.f32 %v322, %v518
        %v520 = vpop.f32.mrb[0].mxu0
        %521 = vmatprep.mubr.bf16.mxu0 0
        %522 = vmatmul.mubr.bf16.gmra.mrb[0].mxu0 %v427
        %v523 = vpop.f32.mrb[0].mxu0
        %v524 = vadd.f32 %v322, %v523
        %v525 = vpop.f32.mrb[0].mxu0
        %v526 = vpop.f32.mrb[0].mxu0
        %v527 = vadd.f32 %v322, %v526
        %v528 = vpop.f32.mrb[0].mxu0
        %529 = vmatprep.mubr.bf16.mxu0 0
        %530 = vmatmul.mubr.bf16.gmra.mrb[0].mxu0 %v430
        %v531 = vpop.f32.mrb[0].mxu0
        %v532 = vadd.f32 %v322, %v531
        %v533 = vpop.f32.mrb[0].mxu0
        %v534 = vpop.f32.mrb[0].mxu0
        %v535 = vadd.f32 %v322, %v534
        %v536 = vpop.f32.mrb[0].mxu0
        %537 = vmatprep.mubr.bf16.mxu0 0
        %538 = vmatmul.mubr.bf16.gmra.mrb[0].mxu0 %v433
        %v539 = vpop.f32.mrb[0].mxu0
        %v540 = vadd.f32 %v322, %v539
        %v541 = vpop.f32.mrb[0].mxu0
        %v542 = vpop.f32.mrb[0].mxu0
        %v543 = vadd.f32 %v322, %v542
        %v544 = vpop.f32.mrb[0].mxu0
        %545 = vmatprep.mubr.bf16.mxu0 0
        %546 = vmatmul.mubr.bf16.gmra.mrb[0].mxu0 %v436
        %v547 = vpop.f32.mrb[0].mxu0
        %v548 = vadd.f32 %v322, %v547
        %v549 = vpop.f32.mrb[0].mxu0
        %v550 = vpop.f32.mrb[0].mxu0
        %v551 = vadd.f32 %v322, %v550
        %v552 = vpop.f32.mrb[0].mxu0
        %553 = vmatprep.mubr.bf16.mxu0 0
        %554 = vmatmul.mubr.bf16.gmra.mrb[0].mxu0 %v439
        %v555 = vpop.f32.mrb[0].mxu0
        %v556 = vadd.f32 %v322, %v555
        %v557 = vpop.f32.mrb[0].mxu0
        %v558 = vpop.f32.mrb[0].mxu0
        %v559 = vadd.f32 %v322, %v558
        %v560 = vpop.f32.mrb[0].mxu0
        %561 = vmatprep.mubr.bf16.mxu0 0
        %562 = vmatmul.mubr.bf16.gmra.mrb[0].mxu0 %v442
        %v563 = vpop.f32.mrb[0].mxu0
        %v564 = vadd.f32 %v322, %v563
        %v565 = vpop.f32.mrb[0].mxu0
        %v566 = vpop.f32.mrb[0].mxu0
        %v567 = vadd.f32 %v322, %v566
        %v568 = vpop.f32.mrb[0].mxu0
        %569 = vmatprep.mubr.bf16.mxu0 0
        %570 = vmatmul.mubr.bf16.gmra.mrb[0].mxu0 %v445
        %v571 = vpop.f32.mrb[0].mxu0
        %v572 = vadd.f32 %v322, %v571
        %v573 = vpop.f32.mrb[0].mxu0
        %v574 = vpop.f32.mrb[0].mxu0
        %v575 = vadd.f32 %v322, %v574
        %v576 = vpop.f32.mrb[0].mxu0
        %577 = vmatprep.mubr.bf16.mxu0 0
        %578 = vmatmul.mubr.bf16.gmra.mrb[0].mxu0 %v448
        %v579 = vpop.f32.mrb[0].mxu0
        %v580 = vadd.f32 %v322, %v579
        %v581 = vpop.f32.mrb[0].mxu0
        %v582 = vpop.f32.mrb[0].mxu0
        %v583 = vadd.f32 %v322, %v582
        %v584 = vpop.f32.mrb[0].mxu0
        %585 = vmatprep.mubr.bf16.mxu0 0
        %586 = vmatmul.mubr.bf16.gmra.mrb[0].mxu0 %v451
        %v587 = vpop.f32.mrb[0].mxu0
        %v588 = vadd.f32 %v322, %v587
        %v589 = vpop.f32.mrb[0].mxu0
        %v590 = vpop.f32.mrb[0].mxu0
        %v591 = vadd.f32 %v322, %v590
        %v592 = vpop.f32.mrb[0].mxu0
        %593 = vmatprep.mubr.bf16.mxu0 0
        %594 = vmatmul.mubr.bf16.gmra.mrb[0].mxu0 %v454
        %v595 = vpop.f32.mrb[0].mxu0
        %v596 = vadd.f32 %v322, %v595
        %v597 = vpop.f32.mrb[0].mxu0
        %v598 = vpop.f32.mrb[0].mxu0
        %v599 = vadd.f32 %v322, %v598
        %v600 = vpop.f32.mrb[0].mxu0
        %601 = vmatprep.mubr.bf16.mxu0 0
        %602 = vmatmul.mubr.bf16.gmra.mrb[0].mxu0 %v457
        %v603 = vpop.f32.mrb[0].mxu0
        %v604 = vadd.f32 %v322, %v603
        %v605 = vpop.f32.mrb[0].mxu0
        %v606 = vpop.f32.mrb[0].mxu0
        %v607 = vadd.f32 %v322, %v606
        %v608 = vpop.f32.mrb[0].mxu0
        %609 = vmatprep.mubr.bf16.mxu0 0
        %610 = vmatmul.mubr.bf16.gmra.mrb[0].mxu0 %v460
        %v611 = vpop.f32.mrb[0].mxu0
        %v612 = vadd.f32 %v322, %v611
        %v613 = vpop.f32.mrb[0].mxu0
        %v614 = vpop.f32.mrb[0].mxu0
        %v615 = vadd.f32 %v322, %v614
        %v616 = vpop.f32.mrb[0].mxu0
        %617 = vmatprep.mubr.bf16.mxu0 0
        %618 = vmatmul.mubr.bf16.gmra.mrb[0].mxu0 %v463
        %v619 = vpop.f32.mrb[0].mxu0
        %v620 = vadd.f32 %v322, %v619
        %v621 = vpop.f32.mrb[0].mxu0
        %v622 = vpop.f32.mrb[0].mxu0
        %v623 = vadd.f32 %v322, %v622
        %v624 = vpop.f32.mrb[0].mxu0
        %625 = vdwg.mxu0
        %vm626 = vcmp.gt.f32.partialorder %v500, 0.0
        %vm627 = vcmp.gt.f32.partialorder %v503, 0.0
        %vm628 = vcmp.gt.f32.partialorder %v508, 0.0
        %vm629 = vcmp.gt.f32.partialorder %v511, 0.0
        %vm630 = vcmp.gt.f32.partialorder %v516, 0.0
        %vm631 = vcmp.gt.f32.partialorder %v519, 0.0
        %vm632 = vcmp.gt.f32.partialorder %v524, 0.0
        %vm633 = vcmp.gt.f32.partialorder %v527, 0.0
        %vm634 = vcmp.gt.f32.partialorder %v532, 0.0
        %vm635 = vcmp.gt.f32.partialorder %v535, 0.0
        %vm636 = vcmp.gt.f32.partialorder %v540, 0.0
        %vm637 = vcmp.gt.f32.partialorder %v543, 0.0
        %vm638 = vcmp.gt.f32.partialorder %v548, 0.0
        %vm639 = vcmp.gt.f32.partialorder %v551, 0.0
        %vm640 = vcmp.gt.f32.partialorder %v556, 0.0
        %vm641 = vcmp.gt.f32.partialorder %v559, 0.0
        %vm642 = vcmp.gt.f32.partialorder %v564, 0.0
        %vm643 = vcmp.gt.f32.partialorder %v567, 0.0
        %vm644 = vcmp.gt.f32.partialorder %v572, 0.0
        %vm645 = vcmp.gt.f32.partialorder %v575, 0.0
        %vm646 = vcmp.gt.f32.partialorder %v580, 0.0
        %vm647 = vcmp.gt.f32.partialorder %v583, 0.0
        %vm648 = vcmp.gt.f32.partialorder %v588, 0.0
        %vm649 = vcmp.gt.f32.partialorder %v591, 0.0
        %vm650 = vcmp.gt.f32.partialorder %v596, 0.0
        %vm651 = vcmp.gt.f32.partialorder %v599, 0.0
        %vm652 = vcmp.gt.f32.partialorder %v604, 0.0
        %vm653 = vcmp.gt.f32.partialorder %v607, 0.0
        %vm654 = vcmp.gt.f32.partialorder %v612, 0.0
        %vm655 = vcmp.gt.f32.partialorder %v615, 0.0
        %vm656 = vcmp.gt.f32.partialorder %v620, 0.0
        %vm657 = vcmp.gt.f32.partialorder %v623, 0.0
        %v658 = vmul.f32 %v500, 0.1
        %v659 = vmul.f32 %v503, 0.1
        %v660 = vmul.f32 %v508, 0.1
        %v661 = vmul.f32 %v511, 0.1
        %v662 = vmul.f32 %v516, 0.1
        %v663 = vmul.f32 %v519, 0.1
        %v664 = vmul.f32 %v524, 0.1
        %v665 = vmul.f32 %v527, 0.1
        %v666 = vmul.f32 %v532, 0.1
        %v667 = vmul.f32 %v535, 0.1
        %v668 = vmul.f32 %v540, 0.1
        %v669 = vmul.f32 %v543, 0.1
        %v670 = vmul.f32 %v548, 0.1
        %v671 = vmul.f32 %v551, 0.1
        %v672 = vmul.f32 %v556, 0.1
        %v673 = vmul.f32 %v559, 0.1
        %v674 = vmul.f32 %v564, 0.1
        %v675 = vmul.f32 %v567, 0.1
        %v676 = vmul.f32 %v572, 0.1
        %v677 = vmul.f32 %v575, 0.1
        %v678 = vmul.f32 %v580, 0.1
        %v679 = vmul.f32 %v583, 0.1
        %v680 = vmul.f32 %v588, 0.1
        %v681 = vmul.f32 %v591, 0.1
        %v682 = vmul.f32 %v596, 0.1
        %v683 = vmul.f32 %v599, 0.1
        %v684 = vmul.f32 %v604, 0.1
        %v685 = vmul.f32 %v607, 0.1
        %v686 = vmul.f32 %v612, 0.1
        %v687 = vmul.f32 %v615, 0.1
        %v688 = vmul.f32 %v620, 0.1
        %v689 = vmul.f32 %v623, 0.1
        %v690 = vsel %vm626, %v500, %v658
        %v691 = vsel %vm627, %v503, %v659
        %v692 = vsel %vm628, %v508, %v660
        %v693 = vsel %vm629, %v511, %v661
        %v694 = vsel %vm630, %v516, %v662
        %v695 = vsel %vm631, %v519, %v663
        %v696 = vsel %vm632, %v524, %v664
        %v697 = vsel %vm633, %v527, %v665
        %v698 = vsel %vm634, %v532, %v666
        %v699 = vsel %vm635, %v535, %v667
        %v700 = vsel %vm636, %v540, %v668
        %v701 = vsel %vm637, %v543, %v669
        %v702 = vsel %vm638, %v548, %v670
        %v703 = vsel %vm639, %v551, %v671
        %v704 = vsel %vm640, %v556, %v672
        %v705 = vsel %vm641, %v559, %v673
        %v706 = vsel %vm642, %v564, %v674
        %v707 = vsel %vm643, %v567, %v675
        %v708 = vsel %vm644, %v572, %v676
        %v709 = vsel %vm645, %v575, %v677
        %v710 = vsel %vm646, %v580, %v678
        %v711 = vsel %vm647, %v583, %v679
        %v712 = vsel %vm648, %v588, %v680
        %v713 = vsel %vm649, %v591, %v681
        %v714 = vsel %vm650, %v596, %v682
        %v715 = vsel %vm651, %v599, %v683
        %v716 = vsel %vm652, %v604, %v684
        %v717 = vsel %vm653, %v607, %v685
        %v718 = vsel %vm654, %v612, %v686
        %v719 = vsel %vm655, %v615, %v687
        %v720 = vsel %vm656, %v620, %v688
        %v721 = vsel %vm657, %v623, %v689
        %v722 = vpack.c.bf16 %v691, %v690
        %v723 = vpack.c.bf16 %v693, %v692
        %v724 = vpack.c.bf16 %v695, %v694
        %v725 = vpack.c.bf16 %v697, %v696
        %v726 = vpack.c.bf16 %v699, %v698
        %v727 = vpack.c.bf16 %v701, %v700
        %v728 = vpack.c.bf16 %v703, %v702
        %v729 = vpack.c.bf16 %v705, %v704
        %v730 = vpack.c.bf16 %v707, %v706
        %v731 = vpack.c.bf16 %v709, %v708
        %v732 = vpack.c.bf16 %v711, %v710
        %v733 = vpack.c.bf16 %v713, %v712
        %v734 = vpack.c.bf16 %v715, %v714
        %v735 = vpack.c.bf16 %v717, %v716
        %v736 = vpack.c.bf16 %v719, %v718
        %v737 = vpack.c.bf16 %v721, %v720
        %v738 = vld [vmem:[%s3] sm:$0xf]
        %v739 = vld [vmem:[%s3 + $0x4] sm:$0xf]
        %v740 = vld [vmem:[%s3 + $0x8] sm:$0xf]
        %v741 = vld [vmem:[%s3 + $0xc] sm:$0xf]
        %v742 = vld [vmem:[%s3 + $0x10] sm:$0xf]
        %v743 = vld [vmem:[%s3 + $0x14] sm:$0xf]
        %v744 = vld [vmem:[%s3 + $0x18] sm:$0xf]
        %v745 = vld [vmem:[%s3 + $0x1c] sm:$0xf]
        %v746 = vld [vmem:[%s4] sm:$0x1]
        %v748 = vlaneseq
        %v749 = vshrl.u32 %v748, 7
        %v750 = vsub.s32 0, %v749
        %v751 = vrot.slane %v746, %v750
        %v761 = vunpack.c.l.b16 %v738
        %v762 = vunpack.c.l.b16 %v739
        %v763 = vunpack.c.l.b16 %v740
        %v764 = vunpack.c.l.b16 %v741
        %v765 = vunpack.c.l.b16 %v742
        %v766 = vunpack.c.l.b16 %v743
        %v767 = vunpack.c.l.b16 %v744
        %v768 = vunpack.c.l.b16 %v745
        %v769 = vpack.c.b16 %v762, %v761
        %v770 = vpack.c.b16 %v764, %v763
        %v771 = vpack.c.b16 %v766, %v765
        %v772 = vpack.c.b16 %v768, %v767
        %vm777 = vcmask 523264
        %v779 = vsel %vm777, %v722, 0
        %v782 = vsel %vm777, %v723, 0
        %v785 = vsel %vm777, %v724, 0
        %v788 = vsel %vm777, %v725, 0
        %v791 = vsel %vm777, %v726, 0
        %v794 = vsel %vm777, %v727, 0
        %v797 = vsel %vm777, %v728, 0
        %v800 = vsel %vm777, %v729, 0
        %v803 = vsel %vm777, %v730, 0
        %v806 = vsel %vm777, %v731, 0
        %v809 = vsel %vm777, %v732, 0
        %v812 = vsel %vm777, %v733, 0
        %v815 = vsel %vm777, %v734, 0
        %v818 = vsel %vm777, %v735, 0
        %v821 = vsel %vm777, %v736, 0
        %v824 = vsel %vm777, %v737, 0
        %826 = vmatprep.subr.bf16.mxu0 0
        %827 = vmatpush1.bf16.msra.mxu0 %v769
        %828 = vmatprep.subr.bf16.mxu0 0
        %829 = vmatpush1.bf16.msra.mxu0 %v770
        %830 = vmatprep.subr.bf16.mxu0 0
        %831 = vmatpush1.bf16.msra.mxu0 %v771
        %832 = vmatprep.subr.bf16.mxu0 0
        %833 = vmatpush1.bf16.msra.mxu0 %v772
        %834 = vmatprep.subr.bf16.mxu0 0
        %835 = vmatpush1.bf16.msra.mxu0 0
        %836 = vmatprep.subr.bf16.mxu0 0
        %837 = vmatpush1.bf16.msra.mxu0 0
        %838 = vmatprep.subr.bf16.mxu0 0
        %839 = vmatpush1.bf16.msra.mxu0 0
        %840 = vmatprep.subr.bf16.mxu0 0
        %841 = vmatpush1.bf16.msra.mxu0 0
        %842 = vmatprep.subr.bf16.mxu0 0
        %843 = vmatpush1.bf16.msra.mxu0 0
        %844 = vmatprep.subr.bf16.mxu0 0
        %845 = vmatpush1.bf16.msra.mxu0 0
        %846 = vmatprep.subr.bf16.mxu0 0
        %847 = vmatpush1.bf16.msra.mxu0 0
        %848 = vmatprep.subr.bf16.mxu0 0
        %849 = vmatpush1.bf16.msra.mxu0 0
        %850 = vmatprep.subr.bf16.mxu0 0
        %851 = vmatpush1.bf16.msra.mxu0 0
        %852 = vmatprep.subr.bf16.mxu0 0
        %853 = vmatpush1.bf16.msra.mxu0 0
        %854 = vmatprep.subr.bf16.mxu0 0
        %855 = vmatpush1.bf16.msra.mxu0 0
        %856 = vmatprep.subr.bf16.mxu0 0
        %857 = vmatpush1.bf16.msra.mxu0 0
        %858 = vmatprep.mubr.bf16.mxu0 0
        %859 = vmatmul.mubr.bf16.gmra.mrb[0].mxu0 %v779
        %v860 = vpop.f32.mrb[0].mxu0
        %v861 = vadd.f32 %v751, %v860
        %v862 = vpop.f32.mrb[0].mxu0
        %v863 = vpop.f32.mrb[0].mxu0
        %v864 = vadd.f32 %v751, %v863
        %v865 = vpop.f32.mrb[0].mxu0
        %866 = vmatprep.mubr.bf16.mxu0 0
        %867 = vmatmul.mubr.bf16.gmra.mrb[0].mxu0 %v782
        %v868 = vpop.f32.mrb[0].mxu0
        %v869 = vadd.f32 %v751, %v868
        %v870 = vpop.f32.mrb[0].mxu0
        %v871 = vpop.f32.mrb[0].mxu0
        %v872 = vadd.f32 %v751, %v871
        %v873 = vpop.f32.mrb[0].mxu0
        %874 = vmatprep.mubr.bf16.mxu0 0
        %875 = vmatmul.mubr.bf16.gmra.mrb[0].mxu0 %v785
        %v876 = vpop.f32.mrb[0].mxu0
        %v877 = vadd.f32 %v751, %v876
        %v878 = vpop.f32.mrb[0].mxu0
        %v879 = vpop.f32.mrb[0].mxu0
        %v880 = vadd.f32 %v751, %v879
        %v881 = vpop.f32.mrb[0].mxu0
        %882 = vmatprep.mubr.bf16.mxu0 0
        %883 = vmatmul.mubr.bf16.gmra.mrb[0].mxu0 %v788
        %v884 = vpop.f32.mrb[0].mxu0
        %v885 = vadd.f32 %v751, %v884
        %v886 = vpop.f32.mrb[0].mxu0
        %v887 = vpop.f32.mrb[0].mxu0
        %v888 = vadd.f32 %v751, %v887
        %v889 = vpop.f32.mrb[0].mxu0
        %890 = vmatprep.mubr.bf16.mxu0 0
        %891 = vmatmul.mubr.bf16.gmra.mrb[0].mxu0 %v791
        %v892 = vpop.f32.mrb[0].mxu0
        %v893 = vadd.f32 %v751, %v892
        %v894 = vpop.f32.mrb[0].mxu0
        %v895 = vpop.f32.mrb[0].mxu0
        %v896 = vadd.f32 %v751, %v895
        %v897 = vpop.f32.mrb[0].mxu0
        %898 = vmatprep.mubr.bf16.mxu0 0
        %899 = vmatmul.mubr.bf16.gmra.mrb[0].mxu0 %v794
        %v900 = vpop.f32.mrb[0].mxu0
        %v901 = vadd.f32 %v751, %v900
        %v902 = vpop.f32.mrb[0].mxu0
        %v903 = vpop.f32.mrb[0].mxu0
        %v904 = vadd.f32 %v751, %v903
        %v905 = vpop.f32.mrb[0].mxu0
        %906 = vmatprep.mubr.bf16.mxu0 0
        %907 = vmatmul.mubr.bf16.gmra.mrb[0].mxu0 %v797
        %v908 = vpop.f32.mrb[0].mxu0
        %v909 = vadd.f32 %v751, %v908
        %v910 = vpop.f32.mrb[0].mxu0
        %v911 = vpop.f32.mrb[0].mxu0
        %v912 = vadd.f32 %v751, %v911
        %v913 = vpop.f32.mrb[0].mxu0
        %914 = vmatprep.mubr.bf16.mxu0 0
        %915 = vmatmul.mubr.bf16.gmra.mrb[0].mxu0 %v800
        %v916 = vpop.f32.mrb[0].mxu0
        %v917 = vadd.f32 %v751, %v916
        %v918 = vpop.f32.mrb[0].mxu0
        %v919 = vpop.f32.mrb[0].mxu0
        %v920 = vadd.f32 %v751, %v919
        %v921 = vpop.f32.mrb[0].mxu0
        %922 = vmatprep.mubr.bf16.mxu0 0
        %923 = vmatmul.mubr.bf16.gmra.mrb[0].mxu0 %v803
        %v924 = vpop.f32.mrb[0].mxu0
        %v925 = vadd.f32 %v751, %v924
        %v926 = vpop.f32.mrb[0].mxu0
        %v927 = vpop.f32.mrb[0].mxu0
        %v928 = vadd.f32 %v751, %v927
        %v929 = vpop.f32.mrb[0].mxu0
        %930 = vmatprep.mubr.bf16.mxu0 0
        %931 = vmatmul.mubr.bf16.gmra.mrb[0].mxu0 %v806
        %v932 = vpop.f32.mrb[0].mxu0
        %v933 = vadd.f32 %v751, %v932
        %v934 = vpop.f32.mrb[0].mxu0
        %v935 = vpop.f32.mrb[0].mxu0
        %v936 = vadd.f32 %v751, %v935
        %v937 = vpop.f32.mrb[0].mxu0
        %938 = vmatprep.mubr.bf16.mxu0 0
        %939 = vmatmul.mubr.bf16.gmra.mrb[0].mxu0 %v809
        %v940 = vpop.f32.mrb[0].mxu0
        %v941 = vadd.f32 %v751, %v940
        %v942 = vpop.f32.mrb[0].mxu0
        %v943 = vpop.f32.mrb[0].mxu0
        %v944 = vadd.f32 %v751, %v943
        %v945 = vpop.f32.mrb[0].mxu0
        %946 = vmatprep.mubr.bf16.mxu0 0
        %947 = vmatmul.mubr.bf16.gmra.mrb[0].mxu0 %v812
        %v948 = vpop.f32.mrb[0].mxu0
        %v949 = vadd.f32 %v751, %v948
        %v950 = vpop.f32.mrb[0].mxu0
        %v951 = vpop.f32.mrb[0].mxu0
        %v952 = vadd.f32 %v751, %v951
        %v953 = vpop.f32.mrb[0].mxu0
        %954 = vmatprep.mubr.bf16.mxu0 0
        %955 = vmatmul.mubr.bf16.gmra.mrb[0].mxu0 %v815
        %v956 = vpop.f32.mrb[0].mxu0
        %v957 = vadd.f32 %v751, %v956
        %v958 = vpop.f32.mrb[0].mxu0
        %v959 = vpop.f32.mrb[0].mxu0
        %v960 = vadd.f32 %v751, %v959
        %v961 = vpop.f32.mrb[0].mxu0
        %962 = vmatprep.mubr.bf16.mxu0 0
        %963 = vmatmul.mubr.bf16.gmra.mrb[0].mxu0 %v818
        %v964 = vpop.f32.mrb[0].mxu0
        %v965 = vadd.f32 %v751, %v964
        %v966 = vpop.f32.mrb[0].mxu0
        %v967 = vpop.f32.mrb[0].mxu0
        %v968 = vadd.f32 %v751, %v967
        %v969 = vpop.f32.mrb[0].mxu0
        %970 = vmatprep.mubr.bf16.mxu0 0
        %971 = vmatmul.mubr.bf16.gmra.mrb[0].mxu0 %v821
        %v972 = vpop.f32.mrb[0].mxu0
        %v973 = vadd.f32 %v751, %v972
        %v974 = vpop.f32.mrb[0].mxu0
        %v975 = vpop.f32.mrb[0].mxu0
        %v976 = vadd.f32 %v751, %v975
        %v977 = vpop.f32.mrb[0].mxu0
        %978 = vmatprep.mubr.bf16.mxu0 0
        %979 = vmatmul.mubr.bf16.gmra.mrb[0].mxu0 %v824
        %v980 = vpop.f32.mrb[0].mxu0
        %v981 = vadd.f32 %v751, %v980
        %v982 = vpop.f32.mrb[0].mxu0
        %v983 = vpop.f32.mrb[0].mxu0
        %v984 = vadd.f32 %v751, %v983
        %v985 = vpop.f32.mrb[0].mxu0
        %986 = vdwg.mxu0
        %vm987 = vcmp.gt.f32.partialorder %v861, 0.0
        %vm988 = vcmp.gt.f32.partialorder %v864, 0.0
        %vm989 = vcmp.gt.f32.partialorder %v869, 0.0
        %vm990 = vcmp.gt.f32.partialorder %v872, 0.0
        %vm991 = vcmp.gt.f32.partialorder %v877, 0.0
        %vm992 = vcmp.gt.f32.partialorder %v880, 0.0
        %vm993 = vcmp.gt.f32.partialorder %v885, 0.0
        %vm994 = vcmp.gt.f32.partialorder %v888, 0.0
        %vm995 = vcmp.gt.f32.partialorder %v893, 0.0
        %vm996 = vcmp.gt.f32.partialorder %v896, 0.0
        %vm997 = vcmp.gt.f32.partialorder %v901, 0.0
        %vm998 = vcmp.gt.f32.partialorder %v904, 0.0
        %vm999 = vcmp.gt.f32.partialorder %v909, 0.0
        %vm1000 = vcmp.gt.f32.partialorder %v912, 0.0
        %vm1001 = vcmp.gt.f32.partialorder %v917, 0.0
        %vm1002 = vcmp.gt.f32.partialorder %v920, 0.0
        %vm1003 = vcmp.gt.f32.partialorder %v925, 0.0
        %vm1004 = vcmp.gt.f32.partialorder %v928, 0.0
        %vm1005 = vcmp.gt.f32.partialorder %v933, 0.0
        %vm1006 = vcmp.gt.f32.partialorder %v936, 0.0
        %vm1007 = vcmp.gt.f32.partialorder %v941, 0.0
        %vm1008 = vcmp.gt.f32.partialorder %v944, 0.0
        %vm1009 = vcmp.gt.f32.partialorder %v949, 0.0
        %vm1010 = vcmp.gt.f32.partialorder %v952, 0.0
        %vm1011 = vcmp.gt.f32.partialorder %v957, 0.0
        %vm1012 = vcmp.gt.f32.partialorder %v960, 0.0
        %vm1013 = vcmp.gt.f32.partialorder %v965, 0.0
        %vm1014 = vcmp.gt.f32.partialorder %v968, 0.0
        %vm1015 = vcmp.gt.f32.partialorder %v973, 0.0
        %vm1016 = vcmp.gt.f32.partialorder %v976, 0.0
        %vm1017 = vcmp.gt.f32.partialorder %v981, 0.0
        %vm1018 = vcmp.gt.f32.partialorder %v984, 0.0
        %v1019 = vmul.f32 %v861, 0.1
        %v1020 = vmul.f32 %v864, 0.1
        %v1021 = vmul.f32 %v869, 0.1
        %v1022 = vmul.f32 %v872, 0.1
        %v1023 = vmul.f32 %v877, 0.1
        %v1024 = vmul.f32 %v880, 0.1
        %v1025 = vmul.f32 %v885, 0.1
        %v1026 = vmul.f32 %v888, 0.1
        %v1027 = vmul.f32 %v893, 0.1
        %v1028 = vmul.f32 %v896, 0.1
        %v1029 = vmul.f32 %v901, 0.1
        %v1030 = vmul.f32 %v904, 0.1
        %v1031 = vmul.f32 %v909, 0.1
        %v1032 = vmul.f32 %v912, 0.1
        %v1033 = vmul.f32 %v917, 0.1
        %v1034 = vmul.f32 %v920, 0.1
        %v1035 = vmul.f32 %v925, 0.1
        %v1036 = vmul.f32 %v928, 0.1
        %v1037 = vmul.f32 %v933, 0.1
        %v1038 = vmul.f32 %v936, 0.1
        %v1039 = vmul.f32 %v941, 0.1
        %v1040 = vmul.f32 %v944, 0.1
        %v1041 = vmul.f32 %v949, 0.1
        %v1042 = vmul.f32 %v952, 0.1
        %v1043 = vmul.f32 %v957, 0.1
        %v1044 = vmul.f32 %v960, 0.1
        %v1045 = vmul.f32 %v965, 0.1
        %v1046 = vmul.f32 %v968, 0.1
        %v1047 = vmul.f32 %v973, 0.1
        %v1048 = vmul.f32 %v976, 0.1
        %v1049 = vmul.f32 %v981, 0.1
        %v1050 = vmul.f32 %v984, 0.1
        %v1051 = vsel %vm987, %v861, %v1019
        %v1052 = vsel %vm988, %v864, %v1020
        %v1053 = vsel %vm989, %v869, %v1021
        %v1054 = vsel %vm990, %v872, %v1022
        %v1055 = vsel %vm991, %v877, %v1023
        %v1056 = vsel %vm992, %v880, %v1024
        %v1057 = vsel %vm993, %v885, %v1025
        %v1058 = vsel %vm994, %v888, %v1026
        %v1059 = vsel %vm995, %v893, %v1027
        %v1060 = vsel %vm996, %v896, %v1028
        %v1061 = vsel %vm997, %v901, %v1029
        %v1062 = vsel %vm998, %v904, %v1030
        %v1063 = vsel %vm999, %v909, %v1031
        %v1064 = vsel %vm1000, %v912, %v1032
        %v1065 = vsel %vm1001, %v917, %v1033
        %v1066 = vsel %vm1002, %v920, %v1034
        %v1067 = vsel %vm1003, %v925, %v1035
        %v1068 = vsel %vm1004, %v928, %v1036
        %v1069 = vsel %vm1005, %v933, %v1037
        %v1070 = vsel %vm1006, %v936, %v1038
        %v1071 = vsel %vm1007, %v941, %v1039
        %v1072 = vsel %vm1008, %v944, %v1040
        %v1073 = vsel %vm1009, %v949, %v1041
        %v1074 = vsel %vm1010, %v952, %v1042
        %v1075 = vsel %vm1011, %v957, %v1043
        %v1076 = vsel %vm1012, %v960, %v1044
        %v1077 = vsel %vm1013, %v965, %v1045
        %v1078 = vsel %vm1014, %v968, %v1046
        %v1079 = vsel %vm1015, %v973, %v1047
        %v1080 = vsel %vm1016, %v976, %v1048
        %v1081 = vsel %vm1017, %v981, %v1049
        %v1082 = vsel %vm1018, %v984, %v1050
        %v1083 = vpack.c.bf16 %v1052, %v1051
        %v1084 = vpack.c.bf16 %v1054, %v1053
        %v1085 = vpack.c.bf16 %v1056, %v1055
        %v1086 = vpack.c.bf16 %v1058, %v1057
        %v1087 = vpack.c.bf16 %v1060, %v1059
        %v1088 = vpack.c.bf16 %v1062, %v1061
        %v1089 = vpack.c.bf16 %v1064, %v1063
        %v1090 = vpack.c.bf16 %v1066, %v1065
        %v1091 = vpack.c.bf16 %v1068, %v1067
        %v1092 = vpack.c.bf16 %v1070, %v1069
        %v1093 = vpack.c.bf16 %v1072, %v1071
        %v1094 = vpack.c.bf16 %v1074, %v1073
        %v1095 = vpack.c.bf16 %v1076, %v1075
        %v1096 = vpack.c.bf16 %v1078, %v1077
        %v1097 = vpack.c.bf16 %v1080, %v1079
        %v1098 = vpack.c.bf16 %v1082, %v1081
        %v1099 = vld [vmem:[%s5] sm:$0xff]
        %v1100 = vld [vmem:[%s5 + $0x8] sm:$0xff]
        %v1101 = vld [vmem:[%s5 + $0x10] sm:$0xff]
        %v1102 = vld [vmem:[%s5 + $0x18] sm:$0xff]
        %v1103 = vld [vmem:[%s5 + $0x20] sm:$0xff]
        %v1104 = vld [vmem:[%s5 + $0x28] sm:$0xff]
        %v1105 = vld [vmem:[%s5 + $0x30] sm:$0xff]
        %v1106 = vld [vmem:[%s5 + $0x38] sm:$0xff]
        %v1107 = vld [vmem:[%s5 + $0x40] sm:$0xff]
        %v1108 = vld [vmem:[%s5 + $0x48] sm:$0xff]
        %v1109 = vld [vmem:[%s5 + $0x50] sm:$0xff]
        %v1110 = vld [vmem:[%s5 + $0x58] sm:$0xff]
        %v1111 = vld [vmem:[%s5 + $0x60] sm:$0xff]
        %v1112 = vld [vmem:[%s5 + $0x68] sm:$0xff]
        %v1113 = vld [vmem:[%s5 + $0x70] sm:$0xff]
        %v1114 = vld [vmem:[%s5 + $0x78] sm:$0xff]
        %v1115 = vld [vmem:[%s6] sm:$0x3]
        %v1117 = vlaneseq
        %v1118 = vshrl.u32 %v1117, 7
        %v1119 = vsub.s32 0, %v1118
        %v1120 = vrot.slane %v1115, %v1119
        %v1121 = vlaneseq
        %v1122 = vshrl.u32 %v1121, 7
        %v1123 = vsub.s32 1, %v1122
        %v1124 = vrot.slane %v1115, %v1123
        %v1143 = vunpack.c.l.b16 %v1099
        %v1144 = vunpack.c.h.b16 %v1099
        %v1145 = vunpack.c.l.b16 %v1100
        %v1146 = vunpack.c.h.b16 %v1100
        %v1147 = vunpack.c.l.b16 %v1101
        %v1148 = vunpack.c.h.b16 %v1101
        %v1149 = vunpack.c.l.b16 %v1102
        %v1150 = vunpack.c.h.b16 %v1102
        %v1151 = vunpack.c.l.b16 %v1103
        %v1152 = vunpack.c.h.b16 %v1103
        %v1153 = vunpack.c.l.b16 %v1104
        %v1154 = vunpack.c.h.b16 %v1104
        %v1155 = vunpack.c.l.b16 %v1105
        %v1156 = vunpack.c.h.b16 %v1105
        %v1157 = vunpack.c.l.b16 %v1106
        %v1158 = vunpack.c.h.b16 %v1106
        %v1159 = vunpack.c.l.b16 %v1107
        %v1160 = vunpack.c.h.b16 %v1107
        %v1161 = vunpack.c.l.b16 %v1108
        %v1162 = vunpack.c.h.b16 %v1108
        %v1163 = vunpack.c.l.b16 %v1109
        %v1164 = vunpack.c.h.b16 %v1109
        %v1165 = vunpack.c.l.b16 %v1110
        %v1166 = vunpack.c.h.b16 %v1110
        %v1167 = vunpack.c.l.b16 %v1111
        %v1168 = vunpack.c.h.b16 %v1111
        %v1169 = vunpack.c.l.b16 %v1112
        %v1170 = vunpack.c.h.b16 %v1112
        %v1171 = vunpack.c.l.b16 %v1113
        %v1172 = vunpack.c.h.b16 %v1113
        %v1173 = vunpack.c.l.b16 %v1114
        %v1174 = vunpack.c.h.b16 %v1114
        %v1175 = vpack.c.b16 %v1145, %v1143
        %v1176 = vpack.c.b16 %v1146, %v1144
        %v1177 = vpack.c.b16 %v1149, %v1147
        %v1178 = vpack.c.b16 %v1150, %v1148
        %v1179 = vpack.c.b16 %v1153, %v1151
        %v1180 = vpack.c.b16 %v1154, %v1152
        %v1181 = vpack.c.b16 %v1157, %v1155
        %v1182 = vpack.c.b16 %v1158, %v1156
        %v1183 = vpack.c.b16 %v1161, %v1159
        %v1184 = vpack.c.b16 %v1162, %v1160
        %v1185 = vpack.c.b16 %v1165, %v1163
        %v1186 = vpack.c.b16 %v1166, %v1164
        %v1187 = vpack.c.b16 %v1169, %v1167
        %v1188 = vpack.c.b16 %v1170, %v1168
        %v1189 = vpack.c.b16 %v1173, %v1171
        %v1190 = vpack.c.b16 %v1174, %v1172
        %1207 = vmatprep.subr.bf16.mxu0 %v1176
        %1208 = vmatpush1.bf16.msra.mxu0 %v1175
        %1209 = vmatprep.subr.bf16.mxu0 %v1178
        %1210 = vmatpush1.bf16.msra.mxu0 %v1177
        %1211 = vmatprep.subr.bf16.mxu0 %v1180
        %1212 = vmatpush1.bf16.msra.mxu0 %v1179
        %1213 = vmatprep.subr.bf16.mxu0 %v1182
        %1214 = vmatpush1.bf16.msra.mxu0 %v1181
        %1215 = vmatprep.subr.bf16.mxu0 %v1184
        %1216 = vmatpush1.bf16.msra.mxu0 %v1183
        %1217 = vmatprep.subr.bf16.mxu0 %v1186
        %1218 = vmatpush1.bf16.msra.mxu0 %v1185
        %1219 = vmatprep.subr.bf16.mxu0 %v1188
        %1220 = vmatpush1.bf16.msra.mxu0 %v1187
        %1221 = vmatprep.subr.bf16.mxu0 %v1190
        %1222 = vmatpush1.bf16.msra.mxu0 %v1189
        %1223 = vmatprep.subr.bf16.mxu0 0
        %1224 = vmatpush1.bf16.msra.mxu0 0
        %1225 = vmatprep.subr.bf16.mxu0 0
        %1226 = vmatpush1.bf16.msra.mxu0 0
        %1227 = vmatprep.subr.bf16.mxu0 0
        %1228 = vmatpush1.bf16.msra.mxu0 0
        %1229 = vmatprep.subr.bf16.mxu0 0
        %1230 = vmatpush1.bf16.msra.mxu0 0
        %1231 = vmatprep.subr.bf16.mxu0 0
        %1232 = vmatpush1.bf16.msra.mxu0 0
        %1233 = vmatprep.subr.bf16.mxu0 0
        %1234 = vmatpush1.bf16.msra.mxu0 0
        %1235 = vmatprep.subr.bf16.mxu0 0
        %1236 = vmatpush1.bf16.msra.mxu0 0
        %1237 = vmatprep.subr.bf16.mxu0 0
        %1238 = vmatpush1.bf16.msra.mxu0 0
        %1239 = vmatprep.mubr.bf16.mxu0 0
        %1240 = vmatmul.mubr.bf16.gmra.mrb[0].mxu0 %v1083
        %v1241 = vpop.f32.mrb[0].mxu0
        %v1242 = vadd.f32 %v1120, %v1241
        %v1243 = vpop.f32.mrb[0].mxu0
        %v1244 = vadd.f32 %v1124, %v1243
        %v1245 = vpop.f32.mrb[0].mxu0
        %v1246 = vadd.f32 %v1120, %v1245
        %v1247 = vpop.f32.mrb[0].mxu0
        %v1248 = vadd.f32 %v1124, %v1247
        %1249 = vmatprep.mubr.bf16.mxu0 0
        %1250 = vmatmul.mubr.bf16.gmra.mrb[0].mxu0 %v1084
        %v1251 = vpop.f32.mrb[0].mxu0
        %v1252 = vadd.f32 %v1120, %v1251
        %v1253 = vpop.f32.mrb[0].mxu0
        %v1254 = vadd.f32 %v1124, %v1253
        %v1255 = vpop.f32.mrb[0].mxu0
        %v1256 = vadd.f32 %v1120, %v1255
        %v1257 = vpop.f32.mrb[0].mxu0
        %v1258 = vadd.f32 %v1124, %v1257
        %1259 = vmatprep.mubr.bf16.mxu0 0
        %1260 = vmatmul.mubr.bf16.gmra.mrb[0].mxu0 %v1085
        %v1261 = vpop.f32.mrb[0].mxu0
        %v1262 = vadd.f32 %v1120, %v1261
        %v1263 = vpop.f32.mrb[0].mxu0
        %v1264 = vadd.f32 %v1124, %v1263
        %v1265 = vpop.f32.mrb[0].mxu0
        %v1266 = vadd.f32 %v1120, %v1265
        %v1267 = vpop.f32.mrb[0].mxu0
        %v1268 = vadd.f32 %v1124, %v1267
        %1269 = vmatprep.mubr.bf16.mxu0 0
        %1270 = vmatmul.mubr.bf16.gmra.mrb[0].mxu0 %v1086
        %v1271 = vpop.f32.mrb[0].mxu0
        %v1272 = vadd.f32 %v1120, %v1271
        %v1273 = vpop.f32.mrb[0].mxu0
        %v1274 = vadd.f32 %v1124, %v1273
        %v1275 = vpop.f32.mrb[0].mxu0
        %v1276 = vadd.f32 %v1120, %v1275
        %v1277 = vpop.f32.mrb[0].mxu0
        %v1278 = vadd.f32 %v1124, %v1277
        %1279 = vmatprep.mubr.bf16.mxu0 0
        %1280 = vmatmul.mubr.bf16.gmra.mrb[0].mxu0 %v1087
        %v1281 = vpop.f32.mrb[0].mxu0
        %v1282 = vadd.f32 %v1120, %v1281
        %v1283 = vpop.f32.mrb[0].mxu0
        %v1284 = vadd.f32 %v1124, %v1283
        %v1285 = vpop.f32.mrb[0].mxu0
        %v1286 = vadd.f32 %v1120, %v1285
        %v1287 = vpop.f32.mrb[0].mxu0
        %v1288 = vadd.f32 %v1124, %v1287
        %1289 = vmatprep.mubr.bf16.mxu0 0
        %1290 = vmatmul.mubr.bf16.gmra.mrb[0].mxu0 %v1088
        %v1291 = vpop.f32.mrb[0].mxu0
        %v1292 = vadd.f32 %v1120, %v1291
        %v1293 = vpop.f32.mrb[0].mxu0
        %v1294 = vadd.f32 %v1124, %v1293
        %v1295 = vpop.f32.mrb[0].mxu0
        %v1296 = vadd.f32 %v1120, %v1295
        %v1297 = vpop.f32.mrb[0].mxu0
        %v1298 = vadd.f32 %v1124, %v1297
        %1299 = vmatprep.mubr.bf16.mxu0 0
        %1300 = vmatmul.mubr.bf16.gmra.mrb[0].mxu0 %v1089
        %v1301 = vpop.f32.mrb[0].mxu0
        %v1302 = vadd.f32 %v1120, %v1301
        %v1303 = vpop.f32.mrb[0].mxu0
        %v1304 = vadd.f32 %v1124, %v1303
        %v1305 = vpop.f32.mrb[0].mxu0
        %v1306 = vadd.f32 %v1120, %v1305
        %v1307 = vpop.f32.mrb[0].mxu0
        %v1308 = vadd.f32 %v1124, %v1307
        %1309 = vmatprep.mubr.bf16.mxu0 0
        %1310 = vmatmul.mubr.bf16.gmra.mrb[0].mxu0 %v1090
        %v1311 = vpop.f32.mrb[0].mxu0
        %v1312 = vadd.f32 %v1120, %v1311
        %v1313 = vpop.f32.mrb[0].mxu0
        %v1314 = vadd.f32 %v1124, %v1313
        %v1315 = vpop.f32.mrb[0].mxu0
        %v1316 = vadd.f32 %v1120, %v1315
        %v1317 = vpop.f32.mrb[0].mxu0
        %v1318 = vadd.f32 %v1124, %v1317
        %1319 = vmatprep.mubr.bf16.mxu0 0
        %1320 = vmatmul.mubr.bf16.gmra.mrb[0].mxu0 %v1091
        %v1321 = vpop.f32.mrb[0].mxu0
        %v1322 = vadd.f32 %v1120, %v1321
        %v1323 = vpop.f32.mrb[0].mxu0
        %v1324 = vadd.f32 %v1124, %v1323
        %v1325 = vpop.f32.mrb[0].mxu0
        %v1326 = vadd.f32 %v1120, %v1325
        %v1327 = vpop.f32.mrb[0].mxu0
        %v1328 = vadd.f32 %v1124, %v1327
        %1329 = vmatprep.mubr.bf16.mxu0 0
        %1330 = vmatmul.mubr.bf16.gmra.mrb[0].mxu0 %v1092
        %v1331 = vpop.f32.mrb[0].mxu0
        %v1332 = vadd.f32 %v1120, %v1331
        %v1333 = vpop.f32.mrb[0].mxu0
        %v1334 = vadd.f32 %v1124, %v1333
        %v1335 = vpop.f32.mrb[0].mxu0
        %v1336 = vadd.f32 %v1120, %v1335
        %v1337 = vpop.f32.mrb[0].mxu0
        %v1338 = vadd.f32 %v1124, %v1337
        %1339 = vmatprep.mubr.bf16.mxu0 0
        %1340 = vmatmul.mubr.bf16.gmra.mrb[0].mxu0 %v1093
        %v1341 = vpop.f32.mrb[0].mxu0
        %v1342 = vadd.f32 %v1120, %v1341
        %v1343 = vpop.f32.mrb[0].mxu0
        %v1344 = vadd.f32 %v1124, %v1343
        %v1345 = vpop.f32.mrb[0].mxu0
        %v1346 = vadd.f32 %v1120, %v1345
        %v1347 = vpop.f32.mrb[0].mxu0
        %v1348 = vadd.f32 %v1124, %v1347
        %1349 = vmatprep.mubr.bf16.mxu0 0
        %1350 = vmatmul.mubr.bf16.gmra.mrb[0].mxu0 %v1094
        %v1351 = vpop.f32.mrb[0].mxu0
        %v1352 = vadd.f32 %v1120, %v1351
        %v1353 = vpop.f32.mrb[0].mxu0
        %v1354 = vadd.f32 %v1124, %v1353
        %v1355 = vpop.f32.mrb[0].mxu0
        %v1356 = vadd.f32 %v1120, %v1355
        %v1357 = vpop.f32.mrb[0].mxu0
        %v1358 = vadd.f32 %v1124, %v1357
        %1359 = vmatprep.mubr.bf16.mxu0 0
        %1360 = vmatmul.mubr.bf16.gmra.mrb[0].mxu0 %v1095
        %v1361 = vpop.f32.mrb[0].mxu0
        %v1362 = vadd.f32 %v1120, %v1361
        %v1363 = vpop.f32.mrb[0].mxu0
        %v1364 = vadd.f32 %v1124, %v1363
        %v1365 = vpop.f32.mrb[0].mxu0
        %v1366 = vadd.f32 %v1120, %v1365
        %v1367 = vpop.f32.mrb[0].mxu0
        %v1368 = vadd.f32 %v1124, %v1367
        %1369 = vmatprep.mubr.bf16.mxu0 0
        %1370 = vmatmul.mubr.bf16.gmra.mrb[0].mxu0 %v1096
        %v1371 = vpop.f32.mrb[0].mxu0
        %v1372 = vadd.f32 %v1120, %v1371
        %v1373 = vpop.f32.mrb[0].mxu0
        %v1374 = vadd.f32 %v1124, %v1373
        %v1375 = vpop.f32.mrb[0].mxu0
        %v1376 = vadd.f32 %v1120, %v1375
        %v1377 = vpop.f32.mrb[0].mxu0
        %v1378 = vadd.f32 %v1124, %v1377
        %1379 = vmatprep.mubr.bf16.mxu0 0
        %1380 = vmatmul.mubr.bf16.gmra.mrb[0].mxu0 %v1097
        %v1381 = vpop.f32.mrb[0].mxu0
        %v1382 = vadd.f32 %v1120, %v1381
        %v1383 = vpop.f32.mrb[0].mxu0
        %v1384 = vadd.f32 %v1124, %v1383
        %v1385 = vpop.f32.mrb[0].mxu0
        %v1386 = vadd.f32 %v1120, %v1385
        %v1387 = vpop.f32.mrb[0].mxu0
        %v1388 = vadd.f32 %v1124, %v1387
        %1389 = vmatprep.mubr.bf16.mxu0 0
        %1390 = vmatmul.mubr.bf16.gmra.mrb[0].mxu0 %v1098
        %v1391 = vpop.f32.mrb[0].mxu0
        %v1392 = vadd.f32 %v1120, %v1391
        %v1393 = vpop.f32.mrb[0].mxu0
        %v1394 = vadd.f32 %v1124, %v1393
        %v1395 = vpop.f32.mrb[0].mxu0
        %v1396 = vadd.f32 %v1120, %v1395
        %v1397 = vpop.f32.mrb[0].mxu0
        %v1398 = vadd.f32 %v1124, %v1397
        %1399 = vdwg.mxu0
        %vm1400 = vcmp.gt.f32.partialorder %v1242, 0.0
        %vm1401 = vcmp.gt.f32.partialorder %v1244, 0.0
        %vm1402 = vcmp.gt.f32.partialorder %v1246, 0.0
        %vm1403 = vcmp.gt.f32.partialorder %v1248, 0.0
        %vm1404 = vcmp.gt.f32.partialorder %v1252, 0.0
        %vm1405 = vcmp.gt.f32.partialorder %v1254, 0.0
        %vm1406 = vcmp.gt.f32.partialorder %v1256, 0.0
        %vm1407 = vcmp.gt.f32.partialorder %v1258, 0.0
        %vm1408 = vcmp.gt.f32.partialorder %v1262, 0.0
        %vm1409 = vcmp.gt.f32.partialorder %v1264, 0.0
        %vm1410 = vcmp.gt.f32.partialorder %v1266, 0.0
        %vm1411 = vcmp.gt.f32.partialorder %v1268, 0.0
        %vm1412 = vcmp.gt.f32.partialorder %v1272, 0.0
        %vm1413 = vcmp.gt.f32.partialorder %v1274, 0.0
        %vm1414 = vcmp.gt.f32.partialorder %v1276, 0.0
        %vm1415 = vcmp.gt.f32.partialorder %v1278, 0.0
        %vm1416 = vcmp.gt.f32.partialorder %v1282, 0.0
        %vm1417 = vcmp.gt.f32.partialorder %v1284, 0.0
        %vm1418 = vcmp.gt.f32.partialorder %v1286, 0.0
        %vm1419 = vcmp.gt.f32.partialorder %v1288, 0.0
        %vm1420 = vcmp.gt.f32.partialorder %v1292, 0.0
        %vm1421 = vcmp.gt.f32.partialorder %v1294, 0.0
        %vm1422 = vcmp.gt.f32.partialorder %v1296, 0.0
        %vm1423 = vcmp.gt.f32.partialorder %v1298, 0.0
        %vm1424 = vcmp.gt.f32.partialorder %v1302, 0.0
        %vm1425 = vcmp.gt.f32.partialorder %v1304, 0.0
        %vm1426 = vcmp.gt.f32.partialorder %v1306, 0.0
        %vm1427 = vcmp.gt.f32.partialorder %v1308, 0.0
        %vm1428 = vcmp.gt.f32.partialorder %v1312, 0.0
        %vm1429 = vcmp.gt.f32.partialorder %v1314, 0.0
        %vm1430 = vcmp.gt.f32.partialorder %v1316, 0.0
        %vm1431 = vcmp.gt.f32.partialorder %v1318, 0.0
        %vm1432 = vcmp.gt.f32.partialorder %v1322, 0.0
        %vm1433 = vcmp.gt.f32.partialorder %v1324, 0.0
        %vm1434 = vcmp.gt.f32.partialorder %v1326, 0.0
        %vm1435 = vcmp.gt.f32.partialorder %v1328, 0.0
        %vm1436 = vcmp.gt.f32.partialorder %v1332, 0.0
        %vm1437 = vcmp.gt.f32.partialorder %v1334, 0.0
        %vm1438 = vcmp.gt.f32.partialorder %v1336, 0.0
        %vm1439 = vcmp.gt.f32.partialorder %v1338, 0.0
        %vm1440 = vcmp.gt.f32.partialorder %v1342, 0.0
        %vm1441 = vcmp.gt.f32.partialorder %v1344, 0.0
        %vm1442 = vcmp.gt.f32.partialorder %v1346, 0.0
        %vm1443 = vcmp.gt.f32.partialorder %v1348, 0.0
        %vm1444 = vcmp.gt.f32.partialorder %v1352, 0.0
        %vm1445 = vcmp.gt.f32.partialorder %v1354, 0.0
        %vm1446 = vcmp.gt.f32.partialorder %v1356, 0.0
        %vm1447 = vcmp.gt.f32.partialorder %v1358, 0.0
        %vm1448 = vcmp.gt.f32.partialorder %v1362, 0.0
        %vm1449 = vcmp.gt.f32.partialorder %v1364, 0.0
        %vm1450 = vcmp.gt.f32.partialorder %v1366, 0.0
        %vm1451 = vcmp.gt.f32.partialorder %v1368, 0.0
        %vm1452 = vcmp.gt.f32.partialorder %v1372, 0.0
        %vm1453 = vcmp.gt.f32.partialorder %v1374, 0.0
        %vm1454 = vcmp.gt.f32.partialorder %v1376, 0.0
        %vm1455 = vcmp.gt.f32.partialorder %v1378, 0.0
        %vm1456 = vcmp.gt.f32.partialorder %v1382, 0.0
        %vm1457 = vcmp.gt.f32.partialorder %v1384, 0.0
        %vm1458 = vcmp.gt.f32.partialorder %v1386, 0.0
        %vm1459 = vcmp.gt.f32.partialorder %v1388, 0.0
        %vm1460 = vcmp.gt.f32.partialorder %v1392, 0.0
        %vm1461 = vcmp.gt.f32.partialorder %v1394, 0.0
        %vm1462 = vcmp.gt.f32.partialorder %v1396, 0.0
        %vm1463 = vcmp.gt.f32.partialorder %v1398, 0.0
        %v1464 = vmul.f32 %v1242, 0.1
        %v1465 = vmul.f32 %v1244, 0.1
        %v1466 = vmul.f32 %v1246, 0.1
        %v1467 = vmul.f32 %v1248, 0.1
        %v1468 = vmul.f32 %v1252, 0.1
        %v1469 = vmul.f32 %v1254, 0.1
        %v1470 = vmul.f32 %v1256, 0.1
        %v1471 = vmul.f32 %v1258, 0.1
        %v1472 = vmul.f32 %v1262, 0.1
        %v1473 = vmul.f32 %v1264, 0.1
        %v1474 = vmul.f32 %v1266, 0.1
        %v1475 = vmul.f32 %v1268, 0.1
        %v1476 = vmul.f32 %v1272, 0.1
        %v1477 = vmul.f32 %v1274, 0.1
        %v1478 = vmul.f32 %v1276, 0.1
        %v1479 = vmul.f32 %v1278, 0.1
        %v1480 = vmul.f32 %v1282, 0.1
        %v1481 = vmul.f32 %v1284, 0.1
        %v1482 = vmul.f32 %v1286, 0.1
        %v1483 = vmul.f32 %v1288, 0.1
        %v1484 = vmul.f32 %v1292, 0.1
        %v1485 = vmul.f32 %v1294, 0.1
        %v1486 = vmul.f32 %v1296, 0.1
        %v1487 = vmul.f32 %v1298, 0.1
        %v1488 = vmul.f32 %v1302, 0.1
        %v1489 = vmul.f32 %v1304, 0.1
        %v1490 = vmul.f32 %v1306, 0.1
        %v1491 = vmul.f32 %v1308, 0.1
        %v1492 = vmul.f32 %v1312, 0.1
        %v1493 = vmul.f32 %v1314, 0.1
        %v1494 = vmul.f32 %v1316, 0.1
        %v1495 = vmul.f32 %v1318, 0.1
        %v1496 = vmul.f32 %v1322, 0.1
        %v1497 = vmul.f32 %v1324, 0.1
        %v1498 = vmul.f32 %v1326, 0.1
        %v1499 = vmul.f32 %v1328, 0.1
        %v1500 = vmul.f32 %v1332, 0.1
        %v1501 = vmul.f32 %v1334, 0.1
        %v1502 = vmul.f32 %v1336, 0.1
        %v1503 = vmul.f32 %v1338, 0.1
        %v1504 = vmul.f32 %v1342, 0.1
        %v1505 = vmul.f32 %v1344, 0.1
        %v1506 = vmul.f32 %v1346, 0.1
        %v1507 = vmul.f32 %v1348, 0.1
        %v1508 = vmul.f32 %v1352, 0.1
        %v1509 = vmul.f32 %v1354, 0.1
        %v1510 = vmul.f32 %v1356, 0.1
        %v1511 = vmul.f32 %v1358, 0.1
        %v1512 = vmul.f32 %v1362, 0.1
        %v1513 = vmul.f32 %v1364, 0.1
        %v1514 = vmul.f32 %v1366, 0.1
        %v1515 = vmul.f32 %v1368, 0.1
        %v1516 = vmul.f32 %v1372, 0.1
        %v1517 = vmul.f32 %v1374, 0.1
        %v1518 = vmul.f32 %v1376, 0.1
        %v1519 = vmul.f32 %v1378, 0.1
        %v1520 = vmul.f32 %v1382, 0.1
        %v1521 = vmul.f32 %v1384, 0.1
        %v1522 = vmul.f32 %v1386, 0.1
        %v1523 = vmul.f32 %v1388, 0.1
        %v1524 = vmul.f32 %v1392, 0.1
        %v1525 = vmul.f32 %v1394, 0.1
        %v1526 = vmul.f32 %v1396, 0.1
        %v1527 = vmul.f32 %v1398, 0.1
        %v1528 = vsel %vm1400, %v1242, %v1464
        %v1529 = vsel %vm1401, %v1244, %v1465
        %v1530 = vsel %vm1402, %v1246, %v1466
        %v1531 = vsel %vm1403, %v1248, %v1467
        %v1532 = vsel %vm1404, %v1252, %v1468
        %v1533 = vsel %vm1405, %v1254, %v1469
        %v1534 = vsel %vm1406, %v1256, %v1470
        %v1535 = vsel %vm1407, %v1258, %v1471
        %v1536 = vsel %vm1408, %v1262, %v1472
        %v1537 = vsel %vm1409, %v1264, %v1473
        %v1538 = vsel %vm1410, %v1266, %v1474
        %v1539 = vsel %vm1411, %v1268, %v1475
        %v1540 = vsel %vm1412, %v1272, %v1476
        %v1541 = vsel %vm1413, %v1274, %v1477
        %v1542 = vsel %vm1414, %v1276, %v1478
        %v1543 = vsel %vm1415, %v1278, %v1479
        %v1544 = vsel %vm1416, %v1282, %v1480
        %v1545 = vsel %vm1417, %v1284, %v1481
        %v1546 = vsel %vm1418, %v1286, %v1482
        %v1547 = vsel %vm1419, %v1288, %v1483
        %v1548 = vsel %vm1420, %v1292, %v1484
        %v1549 = vsel %vm1421, %v1294, %v1485
        %v1550 = vsel %vm1422, %v1296, %v1486
        %v1551 = vsel %vm1423, %v1298, %v1487
        %v1552 = vsel %vm1424, %v1302, %v1488
        %v1553 = vsel %vm1425, %v1304, %v1489
        %v1554 = vsel %vm1426, %v1306, %v1490
        %v1555 = vsel %vm1427, %v1308, %v1491
        %v1556 = vsel %vm1428, %v1312, %v1492
        %v1557 = vsel %vm1429, %v1314, %v1493
        %v1558 = vsel %vm1430, %v1316, %v1494
        %v1559 = vsel %vm1431, %v1318, %v1495
        %v1560 = vsel %vm1432, %v1322, %v1496
        %v1561 = vsel %vm1433, %v1324, %v1497
        %v1562 = vsel %vm1434, %v1326, %v1498
        %v1563 = vsel %vm1435, %v1328, %v1499
        %v1564 = vsel %vm1436, %v1332, %v1500
        %v1565 = vsel %vm1437, %v1334, %v1501
        %v1566 = vsel %vm1438, %v1336, %v1502
        %v1567 = vsel %vm1439, %v1338, %v1503
        %v1568 = vsel %vm1440, %v1342, %v1504
        %v1569 = vsel %vm1441, %v1344, %v1505
        %v1570 = vsel %vm1442, %v1346, %v1506
        %v1571 = vsel %vm1443, %v1348, %v1507
        %v1572 = vsel %vm1444, %v1352, %v1508
        %v1573 = vsel %vm1445, %v1354, %v1509
        %v1574 = vsel %vm1446, %v1356, %v1510
        %v1575 = vsel %vm1447, %v1358, %v1511
        %v1576 = vsel %vm1448, %v1362, %v1512
        %v1577 = vsel %vm1449, %v1364, %v1513
        %v1578 = vsel %vm1450, %v1366, %v1514
        %v1579 = vsel %vm1451, %v1368, %v1515
        %v1580 = vsel %vm1452, %v1372, %v1516
        %v1581 = vsel %vm1453, %v1374, %v1517
        %v1582 = vsel %vm1454, %v1376, %v1518
        %v1583 = vsel %vm1455, %v1378, %v1519
        %v1584 = vsel %vm1456, %v1382, %v1520
        %v1585 = vsel %vm1457, %v1384, %v1521
        %v1586 = vsel %vm1458, %v1386, %v1522
        %v1587 = vsel %vm1459, %v1388, %v1523
        %v1588 = vsel %vm1460, %v1392, %v1524
        %v1589 = vsel %vm1461, %v1394, %v1525
        %v1590 = vsel %vm1462, %v1396, %v1526
        %v1591 = vsel %vm1463, %v1398, %v1527
        %v1592 = vpack.c.bf16 %v1530, %v1528
        %v1593 = vpack.c.bf16 %v1531, %v1529
        %v1594 = vpack.c.bf16 %v1534, %v1532
        %v1595 = vpack.c.bf16 %v1535, %v1533
        %v1596 = vpack.c.bf16 %v1538, %v1536
        %v1597 = vpack.c.bf16 %v1539, %v1537
        %v1598 = vpack.c.bf16 %v1542, %v1540
        %v1599 = vpack.c.bf16 %v1543, %v1541
        %v1600 = vpack.c.bf16 %v1546, %v1544
        %v1601 = vpack.c.bf16 %v1547, %v1545
        %v1602 = vpack.c.bf16 %v1550, %v1548
        %v1603 = vpack.c.bf16 %v1551, %v1549
        %v1604 = vpack.c.bf16 %v1554, %v1552
        %v1605 = vpack.c.bf16 %v1555, %v1553
        %v1606 = vpack.c.bf16 %v1558, %v1556
        %v1607 = vpack.c.bf16 %v1559, %v1557
        %v1608 = vpack.c.bf16 %v1562, %v1560
        %v1609 = vpack.c.bf16 %v1563, %v1561
        %v1610 = vpack.c.bf16 %v1566, %v1564
        %v1611 = vpack.c.bf16 %v1567, %v1565
        %v1612 = vpack.c.bf16 %v1570, %v1568
        %v1613 = vpack.c.bf16 %v1571, %v1569
        %v1614 = vpack.c.bf16 %v1574, %v1572
        %v1615 = vpack.c.bf16 %v1575, %v1573
        %v1616 = vpack.c.bf16 %v1578, %v1576
        %v1617 = vpack.c.bf16 %v1579, %v1577
        %v1618 = vpack.c.bf16 %v1582, %v1580
        %v1619 = vpack.c.bf16 %v1583, %v1581
        %v1620 = vpack.c.bf16 %v1586, %v1584
        %v1621 = vpack.c.bf16 %v1587, %v1585
        %v1622 = vpack.c.bf16 %v1590, %v1588
        %v1623 = vpack.c.bf16 %v1591, %v1589
        %v1656 = vunpack.c.l.b16 %v1592
        %v1657 = vunpack.c.l.b16 %v1593
        %v1658 = vunpack.c.h.b16 %v1592
        %v1659 = vunpack.c.h.b16 %v1593
        %v1660 = vunpack.c.l.b16 %v1594
        %v1661 = vunpack.c.l.b16 %v1595
        %v1662 = vunpack.c.h.b16 %v1594
        %v1663 = vunpack.c.h.b16 %v1595
        %v1664 = vunpack.c.l.b16 %v1596
        %v1665 = vunpack.c.l.b16 %v1597
        %v1666 = vunpack.c.h.b16 %v1596
        %v1667 = vunpack.c.h.b16 %v1597
        %v1668 = vunpack.c.l.b16 %v1598
        %v1669 = vunpack.c.l.b16 %v1599
        %v1670 = vunpack.c.h.b16 %v1598
        %v1671 = vunpack.c.h.b16 %v1599
        %v1672 = vunpack.c.l.b16 %v1600
        %v1673 = vunpack.c.l.b16 %v1601
        %v1674 = vunpack.c.h.b16 %v1600
        %v1675 = vunpack.c.h.b16 %v1601
        %v1676 = vunpack.c.l.b16 %v1602
        %v1677 = vunpack.c.l.b16 %v1603
        %v1678 = vunpack.c.h.b16 %v1602
        %v1679 = vunpack.c.h.b16 %v1603
        %v1680 = vunpack.c.l.b16 %v1604
        %v1681 = vunpack.c.l.b16 %v1605
        %v1682 = vunpack.c.h.b16 %v1604
        %v1683 = vunpack.c.h.b16 %v1605
        %v1684 = vunpack.c.l.b16 %v1606
        %v1685 = vunpack.c.l.b16 %v1607
        %v1686 = vunpack.c.h.b16 %v1606
        %v1687 = vunpack.c.h.b16 %v1607
        %v1688 = vunpack.c.l.b16 %v1608
        %v1689 = vunpack.c.l.b16 %v1609
        %v1690 = vunpack.c.h.b16 %v1608
        %v1691 = vunpack.c.h.b16 %v1609
        %v1692 = vunpack.c.l.b16 %v1610
        %v1693 = vunpack.c.l.b16 %v1611
        %v1694 = vunpack.c.h.b16 %v1610
        %v1695 = vunpack.c.h.b16 %v1611
        %v1696 = vunpack.c.l.b16 %v1612
        %v1697 = vunpack.c.l.b16 %v1613
        %v1698 = vunpack.c.h.b16 %v1612
        %v1699 = vunpack.c.h.b16 %v1613
        %v1700 = vunpack.c.l.b16 %v1614
        %v1701 = vunpack.c.l.b16 %v1615
        %v1702 = vunpack.c.h.b16 %v1614
        %v1703 = vunpack.c.h.b16 %v1615
        %v1704 = vunpack.c.l.b16 %v1616
        %v1705 = vunpack.c.l.b16 %v1617
        %v1706 = vunpack.c.h.b16 %v1616
        %v1707 = vunpack.c.h.b16 %v1617
        %v1708 = vunpack.c.l.b16 %v1618
        %v1709 = vunpack.c.l.b16 %v1619
        %v1710 = vunpack.c.h.b16 %v1618
        %v1711 = vunpack.c.h.b16 %v1619
        %v1712 = vunpack.c.l.b16 %v1620
        %v1713 = vunpack.c.l.b16 %v1621
        %v1714 = vunpack.c.h.b16 %v1620
        %v1715 = vunpack.c.h.b16 %v1621
        %v1716 = vunpack.c.l.b16 %v1622
        %v1717 = vunpack.c.l.b16 %v1623
        %v1718 = vunpack.c.h.b16 %v1622
        %v1719 = vunpack.c.h.b16 %v1623
        %v1720 = vpack.c.b16 %v1657, %v1656
        %v1721 = vpack.c.b16 %v1659, %v1658
        %v1722 = vpack.c.b16 %v1661, %v1660
        %v1723 = vpack.c.b16 %v1663, %v1662
        %v1724 = vpack.c.b16 %v1665, %v1664
        %v1725 = vpack.c.b16 %v1667, %v1666
        %v1726 = vpack.c.b16 %v1669, %v1668
        %v1727 = vpack.c.b16 %v1671, %v1670
        %v1728 = vpack.c.b16 %v1673, %v1672
        %v1729 = vpack.c.b16 %v1675, %v1674
        %v1730 = vpack.c.b16 %v1677, %v1676
        %v1731 = vpack.c.b16 %v1679, %v1678
        %v1732 = vpack.c.b16 %v1681, %v1680
        %v1733 = vpack.c.b16 %v1683, %v1682
        %v1734 = vpack.c.b16 %v1685, %v1684
        %v1735 = vpack.c.b16 %v1687, %v1686
        %v1736 = vpack.c.b16 %v1689, %v1688
        %v1737 = vpack.c.b16 %v1691, %v1690
        %v1738 = vpack.c.b16 %v1693, %v1692
        %v1739 = vpack.c.b16 %v1695, %v1694
        %v1740 = vpack.c.b16 %v1697, %v1696
        %v1741 = vpack.c.b16 %v1699, %v1698
        %v1742 = vpack.c.b16 %v1701, %v1700
        %v1743 = vpack.c.b16 %v1703, %v1702
        %v1744 = vpack.c.b16 %v1705, %v1704
        %v1745 = vpack.c.b16 %v1707, %v1706
        %v1746 = vpack.c.b16 %v1709, %v1708
        %v1747 = vpack.c.b16 %v1711, %v1710
        %v1748 = vpack.c.b16 %v1713, %v1712
        %v1749 = vpack.c.b16 %v1715, %v1714
        %v1750 = vpack.c.b16 %v1717, %v1716
        %v1751 = vpack.c.b16 %v1719, %v1718
        %1784 = vst [vmem:[%s272] sm:$0xff] %v1720
        %1785 = vst [vmem:[%s272 + $0x8] sm:$0xff] %v1721
        %1786 = vst [vmem:[%s272 + $0x10] sm:$0xff] %v1722
        %1787 = vst [vmem:[%s272 + $0x18] sm:$0xff] %v1723
        %1788 = vst [vmem:[%s272 + $0x20] sm:$0xff] %v1724
        %1789 = vst [vmem:[%s272 + $0x28] sm:$0xff] %v1725
        %1790 = vst [vmem:[%s272 + $0x30] sm:$0xff] %v1726
        %1791 = vst [vmem:[%s272 + $0x38] sm:$0xff] %v1727
        %1792 = vst [vmem:[%s272 + $0x40] sm:$0xff] %v1728
        %1793 = vst [vmem:[%s272 + $0x48] sm:$0xff] %v1729
        %1794 = vst [vmem:[%s272 + $0x50] sm:$0xff] %v1730
        %1795 = vst [vmem:[%s272 + $0x58] sm:$0xff] %v1731
        %1796 = vst [vmem:[%s272 + $0x60] sm:$0xff] %v1732
        %1797 = vst [vmem:[%s272 + $0x68] sm:$0xff] %v1733
        %1798 = vst [vmem:[%s272 + $0x70] sm:$0xff] %v1734
        %1799 = vst [vmem:[%s272 + $0x78] sm:$0xff] %v1735
        %1800 = vst [vmem:[%s272 + $0x80] sm:$0xff] %v1736
        %1801 = vst [vmem:[%s272 + $0x88] sm:$0xff] %v1737
        %1802 = vst [vmem:[%s272 + $0x90] sm:$0xff] %v1738
        %1803 = vst [vmem:[%s272 + $0x98] sm:$0xff] %v1739
        %1804 = vst [vmem:[%s272 + $0xa0] sm:$0xff] %v1740
        %1805 = vst [vmem:[%s272 + $0xa8] sm:$0xff] %v1741
        %1806 = vst [vmem:[%s272 + $0xb0] sm:$0xff] %v1742
        %1807 = vst [vmem:[%s272 + $0xb8] sm:$0xff] %v1743
        %1808 = vst [vmem:[%s272 + $0xc0] sm:$0xff] %v1744
        %1809 = vst [vmem:[%s272 + $0xc8] sm:$0xff] %v1745
        %1810 = vst [vmem:[%s272 + $0xd0] sm:$0xff] %v1746
        %1811 = vst [vmem:[%s272 + $0xd8] sm:$0xff] %v1747
        %1812 = vst [vmem:[%s272 + $0xe0] sm:$0xff] %v1748
        %1813 = vst [vmem:[%s272 + $0xe8] sm:$0xff] %v1749
        %1814 = vst [vmem:[%s272 + $0xf0] sm:$0xff] %v1750
        %1815 = vst [vmem:[%s272 + $0xf8] sm:$0xff] %v1751
        %s1816 = sand.u32 %s181, 1
        %s1817 = scalar_lea.sflag [#allocation3], %s1816
        %s1818 = sand.u32 %s181, 1
        %s1819 = smul.addr %s1818, 256
        %s1820 = scalar_lea.vmem [#allocation2], %s1819
        // Predicated region
        $region49: #{tpu_custom_call.1} parent=47 // pred_check
          %p1821 = pneg %p191
        $region50: #{tpu_custom_call.1} parent=47 // pred_check_branch
          %1823 = sbr.rel (%p1821) target = $region52
        $region51: #{tpu_custom_call.1} parent=47 // pred_region
          %s1824 = smul.u32 32, %s21
          %s1826 = ssub.s32 4096, 4096
          %1827 = vsyncadd %s1817, %s1826
          %s1828 = smul.addr %s1824, 2
          %s1829 = smul.addr %s1828, 64
          %s1830 = scalar_lea.hbm %s7, %s1829
          %s1831 = sshll.u32 %s1820, 4
          %s1832 = int_to_ptr.vmem [resolvable:$true] %s1831
          %1837 = dma.vmem_to_hbm [thread:$0]  %s1832, 4096, %s1830, %s1817, 128, 128, 8
        $region52: #{tpu_custom_call.1} parent=47 // pred_fallthru
          _
      $region48: #{tpu_custom_call.1} parent=5 // pred_fallthru
        _
      %p1838 = scmp.le.s32.totalorder 2, %s16
      // Predicated region
      $region53: #{tpu_custom_call.1} parent=5 // pred_check
        %p1839 = pneg %p1838
      $region54: #{tpu_custom_call.1} parent=5 // pred_check_branch
        %1841 = sbr.rel (%p1839) target = $region56
      $region55: #{tpu_custom_call.1} parent=5 // pred_region
        %s1842 = ssub.s32 %s16, 2
        // Predicated region
        $region57: #{tpu_custom_call.1} parent=55 // pred_check
          %p1843 = pneg %p197
        $region58: #{tpu_custom_call.1} parent=55 // pred_check_branch
          %1845 = sbr.rel (%p1843) target = $region60
        $region59: #{tpu_custom_call.1} parent=55 // pred_region
          %s1846 = sand.u32 %s182, 1
          %s1847 = scalar_lea.sflag [#allocation3], %s1846
          %s1848 = sand.u32 %s182, 1
          %s1849 = smul.addr %s1848, 256
          %s1850 = scalar_lea.vmem [#allocation2], %s1849
          %1851 = dma.done %s1847, 4096
        $region60: #{tpu_custom_call.1} parent=55 // pred_fallthru
          _
      $region56: #{tpu_custom_call.1} parent=5 // pred_fallthru
        _
    $region6: #{tpu_custom_call.1} parent=1 // loop_footer
      %s20 = sadd.s32 1, %s16
    $region7: #{tpu_custom_call.1} parent=1 // loop_footer_branch
      %15 = sbr.rel target = $region3
    $region8: #{tpu_custom_call.1} parent=1 // loop_exit
      _
    %1852 = vsyncpa [#allocation3], 1
    %s1853 = scalar_lea.sflag [#allocation3], 1
    %1854 = vsyncpa %s1853, 1

</llo_original>
